<compile_context>
chip_gen: v7x
topology: tpu7x:2x2x1
jax: 0.10.0
libtpu: 0.0.40
codegen_flags: <defaults>
</compile_context>

<pallas_src>
import functools

import jax
import jax.numpy as jnp
from jax.experimental import pallas as pl
from jax.experimental.pallas import tpu as pltpu


# --------------------------------------------------------------------------
# small helpers
# --------------------------------------------------------------------------
def _round_up(x, m):
    return ((x + m - 1) // m) * m


def _largest_divisor_leq(n, target):
    d = max(1, min(n, target))
    while n % d:
        d -= 1
    return d


def _pick_batch_block(b):
    # Split the batch across the leading "parallel" grid axis (v7x megacore)
    # when it is big enough; blocks must stay sublane-aligned unless they cover
    # all of B.
    for cand in (256, 128, 64, 32, 16, 8):
        if b > cand and b % cand == 0:
            return cand
    return b


def _pick_v_block(v):
    # Tile the vocab axis so one (H, vb) bf16 weight tile + (rb, vb) logits tile
    # fits comfortably in VMEM at realistic vocab sizes.
    for cand in (4096, 2048, 1024, 512, 256, 128):
        if v > cand and v % cand == 0:
            return cand
    return v  # TODO(synk): pad V when it has no 128-multiple divisor.


# --------------------------------------------------------------------------
# Kernel 0: hoisted layer-0 input projection  (rows, E) x (E, 4H) + bias.
# --------------------------------------------------------------------------
def _matmul_bias_kernel(x_ref, w_ref, b_ref, o_ref):
    o_ref[...] = (jnp.dot(x_ref[...], w_ref[...],
                          preferred_element_type=jnp.float32) + b_ref[...])


# --------------------------------------------------------------------------
# Kernel 1: the recurrence.  Grid = (batch_blocks, time_chunks).
# State (h, c) carried across time chunks in persistent VMEM scratch.
# --------------------------------------------------------------------------
def _make_dec_kernel(num_layers, hidden, chunk, use_mxu_attention):
    L, H, Tc = num_layers, hidden, chunk
    bf16 = jnp.bfloat16

    def kernel(*refs):
        pre0_ref, enc_ref, h0_ref, c0_ref, whh_ref = refs[:5]
        p = 5
        if L > 1:
            wih_ref, brest_ref = refs[5], refs[6]
            p = 7
        wlc_ref, wlo_ref, blin_ref = refs[p:p + 3]
        attout_ref, attn_ref, hfin_ref, cfin_ref = refs[p + 3:p + 7]
        h_sc, c_sc = refs[p + 7:p + 9]

        t_chunk = pl.program_id(1)

        @pl.when(t_chunk == 0)
        def _():
            h_sc[...] = h0_ref[...]
            c_sc[...] = c0_ref[...]

        # Loop-invariant loads hoisted out of the time loop (weights are bf16).
        enc = enc_ref[...]                                   # (Bb, S, H) f32
        enc_bf = enc.astype(bf16) if use_mxu_attention else None
        whh = [whh_ref[l] for l in range(L)]                 # (H, 4H) bf16
        wih = [wih_ref[l] for l in range(L - 1)] if L > 1 else []
        brest = [brest_ref[l] for l in range(L - 1)] if L > 1 else []  # (1,4H) f32
        wlc = wlc_ref[...]                                   # (H, H) bf16
        wlo = wlo_ref[...]
        blin = blin_ref[...]                                 # (1, H) f32

        def step(t, carry):
            h_prev, c_prev = carry
            hs, cs = [], []
            x = None
            for l in range(L):
                rec = jnp.dot(h_prev[l].astype(bf16), whh[l],
                              preferred_element_type=jnp.float32)
                if l == 0:
                    # layer-0 input projection (incl. biases) was hoisted.
                    gates = pre0_ref[t] + rec
                else:
                    gates = (jnp.dot(x.astype(bf16), wih[l - 1],
                                     preferred_element_type=jnp.float32)
                             + rec + brest[l - 1])
                # PyTorch LSTM gate order: i, f, g, o.  (f32 elementwise.)
                i_g = jax.nn.sigmoid(gates[:, 0:H])
                f_g = jax.nn.sigmoid(gates[:, H:2 * H])
                g_g = jnp.tanh(gates[:, 2 * H:3 * H])
                o_g = jax.nn.sigmoid(gates[:, 3 * H:4 * H])
                c_new = f_g * c_prev[l] + i_g * g_g
                h_new = o_g * jnp.tanh(c_new)
                hs.append(h_new)
                cs.append(c_new)
                x = h_new                                    # inter-layer dropout: identity
            out = x                                          # (Bb, H)

            # ---- dot attention over encoder outputs ----
            if use_mxu_attention:
                scores = jnp.einsum('bqh,bsh->bqs', out[:, None, :].astype(bf16),
                                    enc_bf,
                                    preferred_element_type=jnp.float32)[:, 0, :]
            else:
                # tiny B: VPU/XLU path, overlaps with the h@W_hh MXU work.
                scores = jnp.sum(out[:, None, :] * enc, axis=-1)       # (Bb, S)
            scores = scores - jnp.max(scores, axis=-1, keepdims=True)
            e = jnp.exp(scores)
            attn = e / jnp.sum(e, axis=-1, keepdims=True)              # (Bb, S)
            if use_mxu_attention:
                ctx = jnp.einsum('bqs,bsh->bqh', attn[:, None, :].astype(bf16),
                                 enc_bf,
                                 preferred_element_type=jnp.float32)[:, 0, :]
            else:
                ctx = jnp.sum(attn[:, :, None] * enc, axis=1)          # (Bb, H)

            # linear_out on concat([ctx, out]) == two summed (H, H) dots.
            att_out = jnp.tanh(
                jnp.dot(ctx.astype(bf16), wlc, preferred_element_type=jnp.float32)
                + jnp.dot(out.astype(bf16), wlo, preferred_element_type=jnp.float32)
                + blin)                                                 # (Bb, H)

            attout_ref[t] = att_out
            attn_ref[t] = attn
            return tuple(hs), tuple(cs)

        h_init = tuple(h_sc[l] for l in range(L))
        c_init = tuple(c_sc[l] for l in range(L))

        # Manual unroll-by-2 of the time loop for LLO cross-iteration visibility.
        if Tc % 2 == 0:
            def step2(t2, carry):
                return step(2 * t2 + 1, step(2 * t2, carry))
            h_fin, c_fin = jax.lax.fori_loop(0, Tc // 2, step2, (h_init, c_init))
        else:
            h_fin, c_fin = jax.lax.fori_loop(0, Tc, step, (h_init, c_init))

        for l in range(L):
            h_sc[l] = h_fin[l]
            c_sc[l] = c_fin[l]

        @pl.when(t_chunk == pl.num_programs(1) - 1)
        def _():
            hfin_ref[...] = h_sc[...]
            cfin_ref[...] = c_sc[...]

    return kernel


# --------------------------------------------------------------------------
# Kernel 2: V-tiled vocab projection + two-pass log_softmax.
#   pass 1: logits tiles + online (max, sum-exp) -> lse per row block
#   pass 2: logp = logits - lse
# --------------------------------------------------------------------------
def _proj_pass1_kernel(x_ref, w_ref, b_ref, logits_ref, lse_ref, m_sc, s_sc):
    v = pl.program_id(1)

    @pl.when(v == 0)
    def _():
        m_sc[...] = jnp.full_like(m_sc, -1e30)
        s_sc[...] = jnp.zeros_like(s_sc)

    logits = (jnp.dot(x_ref[...], w_ref[...],
                      preferred_element_type=jnp.float32) + b_ref[...])
    logits_ref[...] = logits

    m_old = m_sc[...]
    m_new = jnp.maximum(m_old, jnp.max(logits, axis=-1, keepdims=True))
    s_sc[...] = (s_sc[...] * jnp.exp(m_old - m_new)
                 + jnp.sum(jnp.exp(logits - m_new), axis=-1, keepdims=True))
    m_sc[...] = m_new

    @pl.when(v == pl.num_programs(1) - 1)
    def _():
        lse_ref[...] = m_sc[...] + jnp.log(s_sc[...])


def _logp_normalize_kernel(logits_ref, lse_ref, o_ref):
    o_ref[...] = logits_ref[...] - lse_ref[...]


# --------------------------------------------------------------------------
# Parameters (matching the PyTorch module's shapes).
# --------------------------------------------------------------------------
def init_params(key, vocab, emb_dim, hidden, num_layers):
    """hidden = 2 * zh_hidden (the decoder LSTM size, bidirectional encoder)."""
    H = hidden
    keys = jax.random.split(key, 8 + 4 * num_layers)
    ki = iter(keys)
    params = {"embedding": jax.random.normal(next(ki), (vocab, emb_dim), jnp.float32) * 0.1}
    layers = []
    for l in range(num_layers):
        in_dim = emb_dim if l == 0 else H
        w_ih = jax.random.normal(next(ki), (4 * H, in_dim), jnp.float32) * 0.1
        w_hh = jax.random.normal(next(ki), (4 * H, H), jnp.float32) * 0.1
        b_ih = jax.random.normal(next(ki), (4 * H,), jnp.float32) * 0.05
        b_hh = jax.random.normal(next(ki), (4 * H,), jnp.float32) * 0.05
        layers.append((w_ih, w_hh, b_ih, b_hh))
    params["lstm"] = layers
    params["w_lin"] = jax.random.normal(next(ki), (H, 2 * H), jnp.float32) * 0.1
    params["b_lin"] = jax.random.normal(next(ki), (H,), jnp.float32) * 0.05
    params["w_out"] = jax.random.normal(next(ki), (vocab, H), jnp.float32) * 0.1
    params["b_out"] = jax.random.normal(next(ki), (vocab,), jnp.float32) * 0.05
    return params


# --------------------------------------------------------------------------
# Wrapper: teacher-forcing forward (is_train=True, teacher_forcing_ratio > 0).
# --------------------------------------------------------------------------
@functools.partial(jax.jit, static_argnames=("num_layers", "eos_id", "time_chunk"))
def dec_forward_train(gtruths, encoder_hidden, encoder_outputs, params,
                      num_layers, eos_id, time_chunk=32):
    bf16 = jnp.bfloat16
    h_enc, c_enc = encoder_hidden                            # (2L, B, zh_hidden)
    # DecoderRNN._cat_directions: concat fwd/bwd directions -> (L, B, H=2*zh_hidden)
    h0 = jnp.concatenate([h_enc[0::2], h_enc[1::2]], axis=2).astype(jnp.float32)
    c0 = jnp.concatenate([c_enc[0::2], c_enc[1::2]], axis=2).astype(jnp.float32)

    B, T = gtruths.shape
    L, _, H = h0.shape
    S = encoder_outputs.shape[1]
    V, E = params["embedding"].shape
    Tdec = T - 1                                             # inputs[:, :-1]
    enc = encoder_outputs.astype(jnp.float32)

    # ---- embedding lookup (XLA gather) + teacher-forcing shift ----
    dec_in = gtruths[:, :-1]
    emb = jnp.take(params["embedding"], dec_in, axis=0)      # (B, Tdec, E)
    emb_t = jnp.transpose(emb, (1, 0, 2))                    # (Tdec, B, E)

    # ---- hoisted layer-0 input projection: one big (rows, E) x (E, 4H) matmul ----
    w_ih0, _, b_ih0, b_hh0 = params["lstm"][0]
    rows = Tdec * B
    rb0 = min(256, _round_up(rows, 8))
    rows_pad = _round_up(rows, rb0)
    x0 = emb_t.reshape(rows, E).astype(bf16)
    if rows_pad != rows:
        x0 = jnp.pad(x0, ((0, rows_pad - rows), (0, 0)))
    pre0_flat = pl.pallas_call(
        _matmul_bias_kernel,
        out_shape=jax.ShapeDtypeStruct((rows_pad, 4 * H), jnp.float32),
        grid=(rows_pad // rb0,),
        in_specs=[pl.BlockSpec((rb0, E), lambda i: (i, 0)),
                  pl.BlockSpec((E, 4 * H), lambda i: (0, 0)),
                  pl.BlockSpec((1, 4 * H), lambda i: (0, 0))],
        out_specs=pl.BlockSpec((rb0, 4 * H), lambda i: (i, 0)),
        compiler_params=pltpu.CompilerParams(dimension_semantics=("parallel",)),
    )(x0, w_ih0.T.astype(bf16), (b_ih0 + b_hh0)[None, :].astype(jnp.float32))
    pre0 = pre0_flat[:rows].reshape(Tdec, B, 4 * H)

    # ---- stacked recurrent weights (bf16 MXU operands, f32 biases) ----
    whhT_all = jnp.stack([w_hh.T for (_, w_hh, _, _) in params["lstm"]]).astype(bf16)
    extra = []
    if L > 1:
        wihT_rest = jnp.stack([params["lstm"][l][0].T for l in range(1, L)]).astype(bf16)
        b_rest = jnp.stack([(params["lstm"][l][2] + params["lstm"][l][3])[None, :]
                            for l in range(1, L)]).astype(jnp.float32)   # (L-1, 1, 4H)
        extra = [wihT_rest, b_rest]
    w_lin = params["w_lin"]                                  # (H, 2H)
    wlc = w_lin[:, :H].T.astype(bf16)                        # context half (H, H)
    wlo = w_lin[:, H:].T.astype(bf16)                        # output  half (H, H)
    blin = params["b_lin"][None, :].astype(jnp.float32)      # (1, H)

    # ---- kernel 1: recurrence over (batch_blocks x time_chunks) grid ----
    Tc = _largest_divisor_leq(Tdec, time_chunk)
    n_chunks = Tdec // Tc
    Bb = _pick_batch_block(B)
    n_bblocks = B // Bb
    use_mxu_attention = Bb >= 16

    in_specs = [
        pl.BlockSpec((Tc, Bb, 4 * H), lambda b, t: (t, b, 0)),   # pre0 (pipelined)
        pl.BlockSpec((Bb, S, H), lambda b, t: (b, 0, 0)),        # enc (per batch block)
        pl.BlockSpec((L, Bb, H), lambda b, t: (0, b, 0)),        # h0
        pl.BlockSpec((L, Bb, H), lambda b, t: (0, b, 0)),        # c0
        pl.BlockSpec((L, H, 4 * H), lambda b, t: (0, 0, 0)),     # W_hh^T stacked
    ]
    if L > 1:
        in_specs += [pl.BlockSpec((L - 1, H, 4 * H), lambda b, t: (0, 0, 0)),
                     pl.BlockSpec((L - 1, 1, 4 * H), lambda b, t: (0, 0, 0))]
    in_specs += [pl.BlockSpec((H, H), lambda b, t: (0, 0)),      # wlc
                 pl.BlockSpec((H, H), lambda b, t: (0, 0)),      # wlo
                 pl.BlockSpec((1, H), lambda b, t: (0, 0))]      # blin
    out_specs = [
        pl.BlockSpec((Tc, Bb, H), lambda b, t: (t, b, 0)),       # att_out
        pl.BlockSpec((Tc, Bb, S), lambda b, t: (t, b, 0)),       # attn
        pl.BlockSpec((L, Bb, H), lambda b, t: (0, b, 0)),        # h_fin
        pl.BlockSpec((L, Bb, H), lambda b, t: (0, b, 0)),        # c_fin
    ]

    att_out, attn, h_fin, c_fin = pl.pallas_call(
        _make_dec_kernel(L, H, Tc, use_mxu_attention),
        out_shape=(jax.ShapeDtypeStruct((Tdec, B, H), jnp.float32),
                   jax.ShapeDtypeStruct((Tdec, B, S), jnp.float32),
                   jax.ShapeDtypeStruct((L, B, H), jnp.float32),
                   jax.ShapeDtypeStruct((L, B, H), jnp.float32)),
        grid=(n_bblocks, n_chunks),
        in_specs=in_specs,
        out_specs=out_specs,
        scratch_shapes=[pltpu.VMEM((L, Bb, H), jnp.float32),     # h carry
                        pltpu.VMEM((L, Bb, H), jnp.float32)],    # c carry
        compiler_params=pltpu.CompilerParams(
            dimension_semantics=("parallel", "arbitrary"),
            vmem_limit_bytes=48 * 1024 * 1024),
    )(pre0, enc, h0, c0, whhT_all, *extra, wlc, wlo, blin)

    # ---- hoisted vocab projection + V-tiled two-pass log_softmax ----
    rb = min(256, _round_up(rows, 8))
    rows_pad2 = _round_up(rows, rb)
    x2 = att_out.reshape(rows, H).astype(bf16)
    if rows_pad2 != rows:
        x2 = jnp.pad(x2, ((0, rows_pad2 - rows), (0, 0)))
    vb = _pick_v_block(V)
    woutT = params["w_out"].T.astype(bf16)                   # (H, V)
    bout = params["b_out"][None, :].astype(jnp.float32)      # (1, V)

    logits, lse = pl.pallas_call(
        _proj_pass1_kernel,
        out_shape=(jax.ShapeDtypeStruct((rows_pad2, V), jnp.float32),
                   jax.ShapeDtypeStruct((rows_pad2, 1), jnp.float32)),
        grid=(rows_pad2 // rb, V // vb),
        in_specs=[pl.BlockSpec((rb, H), lambda r, v: (r, 0)),
                  pl.BlockSpec((H, vb), lambda r, v: (0, v)),
                  pl.BlockSpec((1, vb), lambda r, v: (0, v))],
        out_specs=[pl.BlockSpec((rb, vb), lambda r, v: (r, v)),
                   pl.BlockSpec((rb, 1), lambda r, v: (r, 0))],
        scratch_shapes=[pltpu.VMEM((rb, 1), jnp.float32),        # running max
                        pltpu.VMEM((rb, 1), jnp.float32)],       # running sum-exp
        compiler_params=pltpu.CompilerParams(
            dimension_semantics=("parallel", "arbitrary"),
            vmem_limit_bytes=48 * 1024 * 1024),
    )(x2, woutT, bout)

    logp_flat = pl.pallas_call(
        _logp_normalize_kernel,
        out_shape=jax.ShapeDtypeStruct((rows_pad2, V), jnp.float32),
        grid=(rows_pad2 // rb, V // vb),
        in_specs=[pl.BlockSpec((rb, vb), lambda r, v: (r, v)),
                  pl.BlockSpec((rb, 1), lambda r, v: (r, 0))],
        out_specs=pl.BlockSpec((rb, vb), lambda r, v: (r, v)),
        compiler_params=pltpu.CompilerParams(
            dimension_semantics=("parallel", "arbitrary")),
    )(logits, lse)
    logp = logp_flat[:rows].reshape(Tdec, B, V)

    # ret_dict glue (symbols / lengths, as in DecoderRNN.decode()).
    symbols = jnp.argmax(logp, axis=-1)                      # (Tdec, B)
    eos_mask = symbols == eos_id
    steps = jnp.arange(Tdec, dtype=jnp.int32)[:, None] + 1
    lengths = jnp.where(eos_mask.any(axis=0),
                        jnp.min(jnp.where(eos_mask, steps, Tdec), axis=0),
                        Tdec)
    ret_dict = {"attention_score": attn, "sequence": symbols, "length": lengths}
    return logp, (h_fin, c_fin), ret_dict


# --------------------------------------------------------------------------
# Pure-JAX reference (same bf16 MXU-operand precision) for correctness check.
# --------------------------------------------------------------------------
def _ref_forward(gtruths, encoder_hidden, encoder_outputs, params, num_layers):
    bf = jnp.bfloat16
    h_enc, c_enc = encoder_hidden
    h = jnp.concatenate([h_enc[0::2], h_enc[1::2]], axis=2)
    c = jnp.concatenate([c_enc[0::2], c_enc[1::2]], axis=2)
    L, B, H = h.shape
    emb = jnp.take(params["embedding"], gtruths[:, :-1], axis=0)
    emb_t = jnp.transpose(emb, (1, 0, 2))
    enc = encoder_outputs

    def mm(a, b):
        return jnp.dot(a.astype(bf), b.astype(bf), preferred_element_type=jnp.float32)

    def step(carry, x_t):
        h, c = carry
        inp = x_t
        hs, cs = [], []
        for l in range(L):
            w_ih, w_hh, b_ih, b_hh = params["lstm"][l]
            g = mm(inp, w_ih.T) + mm(h[l], w_hh.T) + b_ih + b_hh
            i_g = jax.nn.sigmoid(g[:, 0:H]); f_g = jax.nn.sigmoid(g[:, H:2 * H])
            g_g = jnp.tanh(g[:, 2 * H:3 * H]); o_g = jax.nn.sigmoid(g[:, 3 * H:4 * H])
            c_new = f_g * c[l] + i_g * g_g
            h_new = o_g * jnp.tanh(c_new)
            hs.append(h_new); cs.append(c_new); inp = h_new
        h, c = jnp.stack(hs), jnp.stack(cs)
        out = inp
        scores = jnp.sum(out[:, None, :] * enc, axis=-1)
        attn = jax.nn.softmax(scores, axis=-1)
        ctx = jnp.sum(attn[:, :, None] * enc, axis=1)
        att_out = jnp.tanh(mm(jnp.concatenate([ctx, out], -1), params["w_lin"].T)
                           + params["b_lin"])
        logits = mm(att_out, params["w_out"].T) + params["b_out"]
        return (h, c), jax.nn.log_softmax(logits, axis=-1)

    (h, c), logp = jax.lax.scan(step, (h, c), emb_t)
    return logp, h, c


if __name__ == "__main__":
    # Small shapes implied by the module's constructor.
    B = 2                 # batch
    zh_max_len = 9        # decoder runs zh_max_len - 1 = 8 teacher-forced steps
    S = 8                 # encoder source length
    zh_hidden = 16
    H = 2 * zh_hidden     # decoder LSTM hidden (bidirectional=True doubles it)
    dec_layers = 2
    zh_embedding_size = 24
    vocab = 64            # stand-in for len(transform.zh_voc)
    eos_id = 2

    key = jax.random.PRNGKey(0)
    kp, kg, ke, kh, kc = jax.random.split(key, 5)
    params = init_params(kp, vocab, zh_embedding_size, H, dec_layers)

    gtruths = jax.random.randint(kg, (B, zh_max_len), 0, vocab, dtype=jnp.int32)
    encoder_outputs = jax.random.normal(ke, (B, S, H), jnp.float32)
    encoder_hidden = (jax.random.normal(kh, (2 * dec_layers, B, zh_hidden), jnp.float32),
                      jax.random.normal(kc, (2 * dec_layers, B, zh_hidden), jnp.float32))

    decoder_outputs, decoder_hidden, ret_dict = dec_forward_train(
        gtruths, encoder_hidden, encoder_outputs, params,
        num_layers=dec_layers, eos_id=eos_id, time_chunk=4)   # 2 time chunks
    jax.block_until_ready(decoder_outputs)
    jax.block_until_ready(decoder_hidden)
    jax.block_until_ready(ret_dict["attention_score"])

    ref_logp, ref_h, ref_c = _ref_forward(gtruths, encoder_hidden, encoder_outputs,
                                          params, dec_layers)
    assert decoder_outputs.shape == (zh_max_len - 1, B, vocab)
    # bf16 MXU operands + transcendental approximations -> looser tolerance.
    assert jnp.allclose(decoder_outputs, ref_logp, atol=2e-2, rtol=2e-2), "logp mismatch"
    assert jnp.allclose(decoder_hidden[0], ref_h, atol=2e-2, rtol=2e-2), "h mismatch"
    assert jnp.allclose(decoder_hidden[1], ref_c, atol=2e-2, rtol=2e-2), "c mismatch"

    print("KERNEL_OK")
</pallas_src>

<mosaic_0001>
module attributes {stable_mosaic.version = 11 : i64} {
  func.func @_matmul_bias_kernel(%arg0: i32, %arg1: memref<16x24xbf16, #tpu.memory_space<vmem>>, %arg2: memref<24x128xbf16, #tpu.memory_space<vmem>>, %arg3: memref<1x128xf32, #tpu.memory_space<vmem>>, %arg4: memref<16x128xf32, #tpu.memory_space<vmem>>) attributes {dimension_semantics = [#tpu.dimension_semantics<parallel>], iteration_bounds = array<i64: 1>, scalar_prefetch = 0 : i64, scratch_operands = 0 : i64, tpu.core_type = #tpu.core_type<tc>, window_params = [{transform_indices = @transform_0, window_bounds = array<i64: 16, 24>}, {pipeline_mode = #tpu.pipeline_mode<synchronous>, transform_indices = @transform_1, window_bounds = array<i64: 24, 128>}, {pipeline_mode = #tpu.pipeline_mode<synchronous>, transform_indices = @transform_2, window_bounds = array<i64: 1, 128>}, {transform_indices = @transform_3, window_bounds = array<i64: 16, 128>}]} {
    %c0 = arith.constant 0 : index
    %c0_0 = arith.constant 0 : index
    %0 = vector.load %arg1[%c0, %c0_0] : memref<16x24xbf16, #tpu.memory_space<vmem>>, vector<16x24xbf16>
    %c0_1 = arith.constant 0 : index
    %c0_2 = arith.constant 0 : index
    %1 = vector.load %arg2[%c0_1, %c0_2] : memref<24x128xbf16, #tpu.memory_space<vmem>>, vector<24x128xbf16>
    %cst = arith.constant dense<0.000000e+00> : vector<16x128xf32>
    %2 = tpu.matmul %0, %1, %cst {dimension_numbers = #tpu.dot_dimension_numbers<[1], [0], [0], [1], [0, 0, 1, 1], [], []>} : vector<16x24xbf16>, vector<24x128xbf16>, vector<16x128xf32> -> vector<16x128xf32>
    %c0_3 = arith.constant 0 : index
    %c0_4 = arith.constant 0 : index
    %3 = vector.load %arg3[%c0_3, %c0_4] : memref<1x128xf32, #tpu.memory_space<vmem>>, vector<1x128xf32>
    %4 = vector.broadcast %3 : vector<1x128xf32> to vector<16x128xf32>
    %5 = arith.addf %2, %4 : vector<16x128xf32>
    %c0_5 = arith.constant 0 : index
    %c0_6 = arith.constant 0 : index
    %6 = vector.load %arg4[%c0_5, %c0_6] : memref<16x128xf32, #tpu.memory_space<vmem>>, vector<16x128xf32>
    tpu.vector_store %arg4[%c0_5, %c0_6], %5 {strides = array<i32>} : memref<16x128xf32, #tpu.memory_space<vmem>>, vector<16x128xf32>,
    return
  }
  func.func @transform_0(%arg0: i32) -> (i32, i32) {
    %c0_i32 = arith.constant 0 : i32
    %c0_i32_0 = arith.constant 0 : i32
    return %arg0, %c0_i32 : i32, i32
  }
  func.func @transform_1(%arg0: i32) -> (i32, i32) {
    %c0_i32 = arith.constant 0 : i32
    %c0_i32_0 = arith.constant 0 : i32
    %c0_i32_1 = arith.constant 0 : i32
    return %c0_i32, %c0_i32_0 : i32, i32
  }
  func.func @transform_2(%arg0: i32) -> (i32, i32) {
    %c0_i32 = arith.constant 0 : i32
    %c0_i32_0 = arith.constant 0 : i32
    %c0_i32_1 = arith.constant 0 : i32
    return %c0_i32, %c0_i32_0 : i32, i32
  }
  func.func @transform_3(%arg0: i32) -> (i32, i32) {
    %c0_i32 = arith.constant 0 : i32
    %c0_i32_0 = arith.constant 0 : i32
    return %arg0, %c0_i32 : i32, i32
  }
}

module attributes {stable_mosaic.version = 11 : i64} {
  func.func @kernel(%arg0: i32, %arg1: i32, %arg2: memref<4x2x128xf32, #tpu.memory_space<vmem>>, %arg3: memref<2x8x32xf32, #tpu.memory_space<vmem>>, %arg4: memref<2x2x32xf32, #tpu.memory_space<vmem>>, %arg5: memref<2x2x32xf32, #tpu.memory_space<vmem>>, %arg6: memref<2x32x128xbf16, #tpu.memory_space<vmem>>, %arg7: memref<1x32x128xbf16, #tpu.memory_space<vmem>>, %arg8: memref<1x1x128xf32, #tpu.memory_space<vmem>>, %arg9: memref<32x32xbf16, #tpu.memory_space<vmem>>, %arg10: memref<32x32xbf16, #tpu.memory_space<vmem>>, %arg11: memref<1x32xf32, #tpu.memory_space<vmem>>, %arg12: memref<4x2x32xf32, #tpu.memory_space<vmem>>, %arg13: memref<4x2x8xf32, #tpu.memory_space<vmem>>, %arg14: memref<2x2x32xf32, #tpu.memory_space<vmem>>, %arg15: memref<2x2x32xf32, #tpu.memory_space<vmem>>, %arg16: memref<2x2x32xf32, #tpu.memory_space<vmem>>, %arg17: memref<2x2x32xf32, #tpu.memory_space<vmem>>) attributes {dimension_semantics = [#tpu.dimension_semantics<parallel>, #tpu.dimension_semantics<arbitrary>], iteration_bounds = array<i64: 1, 2>, scalar_prefetch = 0 : i64, scratch_operands = 2 : i64, tpu.core_type = #tpu.core_type<tc>, window_params = [{transform_indices = @transform_0, window_bounds = array<i64: 4, 2, 128>}, {transform_indices = @transform_1, window_bounds = array<i64: 2, 8, 32>}, {transform_indices = @transform_2, window_bounds = array<i64: 2, 2, 32>}, {transform_indices = @transform_3, window_bounds = array<i64: 2, 2, 32>}, {pipeline_mode = #tpu.pipeline_mode<synchronous>, transform_indices = @transform_4, window_bounds = array<i64: 2, 32, 128>}, {pipeline_mode = #tpu.pipeline_mode<synchronous>, transform_indices = @transform_5, window_bounds = array<i64: 1, 32, 128>}, {pipeline_mode = #tpu.pipeline_mode<synchronous>, transform_indices = @transform_6, window_bounds = array<i64: 1, 1, 128>}, {pipeline_mode = #tpu.pipeline_mode<synchronous>, transform_indices = @transform_7, window_bounds = array<i64: 32, 32>}, {pipeline_mode = #tpu.pipeline_mode<synchronous>, transform_indices = @transform_8, window_bounds = array<i64: 32, 32>}, {pipeline_mode = #tpu.pipeline_mode<synchronous>, transform_indices = @transform_9, window_bounds = array<i64: 1, 32>}, {transform_indices = @transform_10, window_bounds = array<i64: 4, 2, 32>}, {transform_indices = @transform_11, window_bounds = array<i64: 4, 2, 8>}, {transform_indices = @transform_12, window_bounds = array<i64: 2, 2, 32>}, {transform_indices = @transform_13, window_bounds = array<i64: 2, 2, 32>}]} {
    %c0_i32 = arith.constant 0 : i32
    %0 = arith.cmpi eq, %arg1, %c0_i32 : i32
    %1 = arith.extui %0 : i1 to i32
    %c0_i32_0 = arith.constant 0 : i32
    %2 = arith.cmpi ne, %1, %c0_i32_0 : i32
    scf.if %2 {
      %c0_48 = arith.constant 0 : index
      %c0_49 = arith.constant 0 : index
      %c0_50 = arith.constant 0 : index
      %40 = vector.load %arg4[%c0_48, %c0_49, %c0_50] : memref<2x2x32xf32, #tpu.memory_space<vmem>>, vector<2x2x32xf32>
      %c0_51 = arith.constant 0 : index
      %c0_52 = arith.constant 0 : index
      %c0_53 = arith.constant 0 : index
      %41 = vector.load %arg16[%c0_51, %c0_52, %c0_53] : memref<2x2x32xf32, #tpu.memory_space<vmem>>, vector<2x2x32xf32>
      tpu.vector_store %arg16[%c0_51, %c0_52, %c0_53], %40 {strides = array<i32>} : memref<2x2x32xf32, #tpu.memory_space<vmem>>, vector<2x2x32xf32>,
      %c0_54 = arith.constant 0 : index
      %c0_55 = arith.constant 0 : index
      %c0_56 = arith.constant 0 : index
      %42 = vector.load %arg5[%c0_54, %c0_55, %c0_56] : memref<2x2x32xf32, #tpu.memory_space<vmem>>, vector<2x2x32xf32>
      %c0_57 = arith.constant 0 : index
      %c0_58 = arith.constant 0 : index
      %c0_59 = arith.constant 0 : index
      %43 = vector.load %arg17[%c0_57, %c0_58, %c0_59] : memref<2x2x32xf32, #tpu.memory_space<vmem>>, vector<2x2x32xf32>
      tpu.vector_store %arg17[%c0_57, %c0_58, %c0_59], %42 {strides = array<i32>} : memref<2x2x32xf32, #tpu.memory_space<vmem>>, vector<2x2x32xf32>,
    } else {
    }
    %c0 = arith.constant 0 : index
    %c0_1 = arith.constant 0 : index
    %c0_2 = arith.constant 0 : index
    %3 = vector.load %arg3[%c0, %c0_1, %c0_2] : memref<2x8x32xf32, #tpu.memory_space<vmem>>, vector<2x8x32xf32>
    %c0_3 = arith.constant 0 : index
    %c0_4 = arith.constant 0 : index
    %c0_5 = arith.constant 0 : index
    %4 = vector.load %arg6[%c0_3, %c0_4, %c0_5] : memref<2x32x128xbf16, #tpu.memory_space<vmem>>, vector<1x32x128xbf16>
    %5 = vector.shape_cast %4 : vector<1x32x128xbf16> to vector<32x128xbf16>
    %c1 = arith.constant 1 : index
    %c0_6 = arith.constant 0 : index
    %c0_7 = arith.constant 0 : index
    %6 = vector.load %arg6[%c1, %c0_6, %c0_7] : memref<2x32x128xbf16, #tpu.memory_space<vmem>>, vector<1x32x128xbf16>
    %7 = vector.shape_cast %6 : vector<1x32x128xbf16> to vector<32x128xbf16>
    %c0_8 = arith.constant 0 : index
    %c0_9 = arith.constant 0 : index
    %c0_10 = arith.constant 0 : index
    %8 = vector.load %arg7[%c0_8, %c0_9, %c0_10] : memref<1x32x128xbf16, #tpu.memory_space<vmem>>, vector<1x32x128xbf16>
    %9 = vector.shape_cast %8 : vector<1x32x128xbf16> to vector<32x128xbf16>
    %c0_11 = arith.constant 0 : index
    %c0_12 = arith.constant 0 : index
    %c0_13 = arith.constant 0 : index
    %10 = vector.load %arg8[%c0_11, %c0_12, %c0_13] : memref<1x1x128xf32, #tpu.memory_space<vmem>>, vector<1x1x128xf32>
    %11 = vector.shape_cast %10 : vector<1x1x128xf32> to vector<1x128xf32>
    %c0_14 = arith.constant 0 : index
    %c0_15 = arith.constant 0 : index
    %12 = vector.load %arg9[%c0_14, %c0_15] : memref<32x32xbf16, #tpu.memory_space<vmem>>, vector<32x32xbf16>
    %c0_16 = arith.constant 0 : index
    %c0_17 = arith.constant 0 : index
    %13 = vector.load %arg10[%c0_16, %c0_17] : memref<32x32xbf16, #tpu.memory_space<vmem>>, vector<32x32xbf16>
    %c0_18 = arith.constant 0 : index
    %c0_19 = arith.constant 0 : index
    %14 = vector.load %arg11[%c0_18, %c0_19] : memref<1x32xf32, #tpu.memory_space<vmem>>, vector<1x32xf32>
    %c0_20 = arith.constant 0 : index
    %c0_21 = arith.constant 0 : index
    %c0_22 = arith.constant 0 : index
    %15 = vector.load %arg16[%c0_20, %c0_21, %c0_22] : memref<2x2x32xf32, #tpu.memory_space<vmem>>, vector<1x2x32xf32>
    %16 = vector.shape_cast %15 : vector<1x2x32xf32> to vector<2x32xf32>
    %c1_23 = arith.constant 1 : index
    %c0_24 = arith.constant 0 : index
    %c0_25 = arith.constant 0 : index
    %17 = vector.load %arg16[%c1_23, %c0_24, %c0_25] : memref<2x2x32xf32, #tpu.memory_space<vmem>>, vector<1x2x32xf32>
    %18 = vector.shape_cast %17 : vector<1x2x32xf32> to vector<2x32xf32>
    %c0_26 = arith.constant 0 : index
    %c0_27 = arith.constant 0 : index
    %c0_28 = arith.constant 0 : index
    %19 = vector.load %arg17[%c0_26, %c0_27, %c0_28] : memref<2x2x32xf32, #tpu.memory_space<vmem>>, vector<1x2x32xf32>
    %20 = vector.shape_cast %19 : vector<1x2x32xf32> to vector<2x32xf32>
    %c1_29 = arith.constant 1 : index
    %c0_30 = arith.constant 0 : index
    %c0_31 = arith.constant 0 : index
    %21 = vector.load %arg17[%c1_29, %c0_30, %c0_31] : memref<2x2x32xf32, #tpu.memory_space<vmem>>, vector<1x2x32xf32>
    %22 = vector.shape_cast %21 : vector<1x2x32xf32> to vector<2x32xf32>
    %c0_i32_32 = arith.constant 0 : i32
    %c2_i32 = arith.constant 2 : i32
    %23 = arith.addi %c0_i32_32, %c2_i32 : i32
    %c1_i32 = arith.constant 1 : i32
    %24:4 = scf.for %arg18 = %c0_i32_32 to %23 step %c1_i32 iter_args(%arg19 = %16, %arg20 = %18, %arg21 = %20, %arg22 = %22) -> (vector<2x32xf32>, vector<2x32xf32>, vector<2x32xf32>, vector<2x32xf32>)  : i32 {
      %c2_i32_48 = arith.constant 2 : i32
      %40 = arith.muli %c2_i32_48, %arg18 : i32
      %c1_i32_49 = arith.constant 1 : i32
      %41 = arith.addi %40, %c1_i32_49 : i32
      %c2_i32_50 = arith.constant 2 : i32
      %42 = arith.muli %c2_i32_50, %arg18 : i32
      %43 = arith.truncf %arg19 : vector<2x32xf32> to vector<2x32xbf16>
      %cst = arith.constant dense<0.000000e+00> : vector<2x128xf32>
      %44 = tpu.matmul %43, %5, %cst {dimension_numbers = #tpu.dot_dimension_numbers<[1], [0], [0], [1], [0, 0, 1, 1], [], []>} : vector<2x32xbf16>, vector<32x128xbf16>, vector<2x128xf32> -> vector<2x128xf32>
      %45 = arith.index_cast %42 : i32 to index
      %c0_51 = arith.constant 0 : index
      %c0_52 = arith.constant 0 : index
      %46 = vector.load %arg2[%45, %c0_51, %c0_52] : memref<4x2x128xf32, #tpu.memory_space<vmem>>, vector<1x2x128xf32>
      %47 = vector.shape_cast %46 : vector<1x2x128xf32> to vector<2x128xf32>
      %48 = arith.addf %47, %44 : vector<2x128xf32>
      %49 = vector.extract_strided_slice %48 {offsets = [0, 0], sizes = [2, 32], strides = [1, 1]} : vector<2x128xf32> to vector<2x32xf32>
      %50 = arith.negf %49 : vector<2x32xf32>
      %51 = math.exp %50 : vector<2x32xf32>
      %cst_53 = arith.constant 1.000000e+00 : f32
      %52 = vector.broadcast %cst_53 : f32 to vector<2x32xf32>
      %53 = arith.addf %52, %51 : vector<2x32xf32>
      %54 = arith.divf %52, %53 : vector<2x32xf32>
      %55 = vector.extract_strided_slice %48 {offsets = [0, 32], sizes = [2, 32], strides = [1, 1]} : vector<2x128xf32> to vector<2x32xf32>
      %56 = arith.negf %55 : vector<2x32xf32>
      %57 = math.exp %56 : vector<2x32xf32>
      %cst_54 = arith.constant 1.000000e+00 : f32
      %58 = vector.broadcast %cst_54 : f32 to vector<2x32xf32>
      %59 = arith.addf %58, %57 : vector<2x32xf32>
      %60 = arith.divf %58, %59 : vector<2x32xf32>
      %61 = vector.extract_strided_slice %48 {offsets = [0, 64], sizes = [2, 32], strides = [1, 1]} : vector<2x128xf32> to vector<2x32xf32>
      %62 = math.tanh %61 : vector<2x32xf32>
      %63 = vector.extract_strided_slice %48 {offsets = [0, 96], sizes = [2, 32], strides = [1, 1]} : vector<2x128xf32> to vector<2x32xf32>
      %64 = arith.negf %63 : vector<2x32xf32>
      %65 = math.exp %64 : vector<2x32xf32>
      %cst_55 = arith.constant 1.000000e+00 : f32
      %66 = vector.broadcast %cst_55 : f32 to vector<2x32xf32>
      %67 = arith.addf %66, %65 : vector<2x32xf32>
      %68 = arith.divf %66, %67 : vector<2x32xf32>
      %69 = arith.mulf %60, %arg21 : vector<2x32xf32>
      %70 = arith.mulf %54, %62 : vector<2x32xf32>
      %71 = arith.addf %69, %70 : vector<2x32xf32>
      %72 = math.tanh %71 : vector<2x32xf32>
      %73 = arith.mulf %68, %72 : vector<2x32xf32>
      %74 = arith.truncf %arg20 : vector<2x32xf32> to vector<2x32xbf16>
      %cst_56 = arith.constant dense<0.000000e+00> : vector<2x128xf32>
      %75 = tpu.matmul %74, %7, %cst_56 {dimension_numbers = #tpu.dot_dimension_numbers<[1], [0], [0], [1], [0, 0, 1, 1], [], []>} : vector<2x32xbf16>, vector<32x128xbf16>, vector<2x128xf32> -> vector<2x128xf32>
      %76 = arith.truncf %73 : vector<2x32xf32> to vector<2x32xbf16>
      %cst_57 = arith.constant dense<0.000000e+00> : vector<2x128xf32>
      %77 = tpu.matmul %76, %9, %cst_57 {dimension_numbers = #tpu.dot_dimension_numbers<[1], [0], [0], [1], [0, 0, 1, 1], [], []>} : vector<2x32xbf16>, vector<32x128xbf16>, vector<2x128xf32> -> vector<2x128xf32>
      %78 = arith.addf %77, %75 : vector<2x128xf32>
      %79 = vector.broadcast %11 : vector<1x128xf32> to vector<2x128xf32>
      %80 = arith.addf %78, %79 : vector<2x128xf32>
      %81 = vector.extract_strided_slice %80 {offsets = [0, 0], sizes = [2, 32], strides = [1, 1]} : vector<2x128xf32> to vector<2x32xf32>
      %82 = arith.negf %81 : vector<2x32xf32>
      %83 = math.exp %82 : vector<2x32xf32>
      %cst_58 = arith.constant 1.000000e+00 : f32
      %84 = vector.broadcast %cst_58 : f32 to vector<2x32xf32>
      %85 = arith.addf %84, %83 : vector<2x32xf32>
      %86 = arith.divf %84, %85 : vector<2x32xf32>
      %87 = vector.extract_strided_slice %80 {offsets = [0, 32], sizes = [2, 32], strides = [1, 1]} : vector<2x128xf32> to vector<2x32xf32>
      %88 = arith.negf %87 : vector<2x32xf32>
      %89 = math.exp %88 : vector<2x32xf32>
      %cst_59 = arith.constant 1.000000e+00 : f32
      %90 = vector.broadcast %cst_59 : f32 to vector<2x32xf32>
      %91 = arith.addf %90, %89 : vector<2x32xf32>
      %92 = arith.divf %90, %91 : vector<2x32xf32>
      %93 = vector.extract_strided_slice %80 {offsets = [0, 64], sizes = [2, 32], strides = [1, 1]} : vector<2x128xf32> to vector<2x32xf32>
      %94 = math.tanh %93 : vector<2x32xf32>
      %95 = vector.extract_strided_slice %80 {offsets = [0, 96], sizes = [2, 32], strides = [1, 1]} : vector<2x128xf32> to vector<2x32xf32>
      %96 = arith.negf %95 : vector<2x32xf32>
      %97 = math.exp %96 : vector<2x32xf32>
      %cst_60 = arith.constant 1.000000e+00 : f32
      %98 = vector.broadcast %cst_60 : f32 to vector<2x32xf32>
      %99 = arith.addf %98, %97 : vector<2x32xf32>
      %100 = arith.divf %98, %99 : vector<2x32xf32>
      %101 = arith.mulf %92, %arg22 : vector<2x32xf32>
      %102 = arith.mulf %86, %94 : vector<2x32xf32>
      %103 = arith.addf %101, %102 : vector<2x32xf32>
      %104 = math.tanh %103 : vector<2x32xf32>
      %105 = arith.mulf %100, %104 : vector<2x32xf32>
      %106 = vector.shape_cast %105 : vector<2x32xf32> to vector<2x1x32xf32>
      %107 = vector.broadcast %106 : vector<2x1x32xf32> to vector<2x8x32xf32>
      %108 = arith.mulf %107, %3 : vector<2x8x32xf32>
      %cst_61 = arith.constant dense<0.000000e+00> : vector<2x8xf32>
      %109 = vector.multi_reduction <add>, %108, %cst_61 [2] : vector<2x8x32xf32> to vector<2x8xf32>
      %cst_62 = arith.constant dense<0xFF800000> : vector<2xf32>
      %110 = vector.multi_reduction <maximumf>, %109, %cst_62 [1] : vector<2x8xf32> to vector<2xf32>
      %111 = vector.shape_cast %110 : vector<2xf32> to vector<2x1xf32>
      %112 = vector.broadcast %111 : vector<2x1xf32> to vector<2x8xf32>
      %113 = arith.subf %109, %112 : vector<2x8xf32>
      %114 = math.exp %113 : vector<2x8xf32>
      %cst_63 = arith.constant dense<0.000000e+00> : vector<2xf32>
      %115 = vector.multi_reduction <add>, %114, %cst_63 [1] : vector<2x8xf32> to vector<2xf32>
      %116 = vector.shape_cast %115 : vector<2xf32> to vector<2x1xf32>
      %117 = vector.broadcast %116 : vector<2x1xf32> to vector<2x8xf32>
      %118 = arith.divf %114, %117 : vector<2x8xf32>
      %119 = vector.shape_cast %118 : vector<2x8xf32> to vector<2x8x1xf32>
      %120 = vector.broadcast %119 : vector<2x8x1xf32> to vector<2x8x32xf32>
      %121 = arith.mulf %120, %3 : vector<2x8x32xf32>
      %cst_64 = arith.constant dense<0.000000e+00> : vector<2x32xf32>
      %122 = vector.multi_reduction <add>, %121, %cst_64 [1] : vector<2x8x32xf32> to vector<2x32xf32>
      %123 = arith.truncf %122 : vector<2x32xf32> to vector<2x32xbf16>
      %cst_65 = arith.constant dense<0.000000e+00> : vector<2x32xf32>
      %124 = tpu.matmul %123, %12, %cst_65 {dimension_numbers = #tpu.dot_dimension_numbers<[1], [0], [0], [1], [0, 0, 1, 1], [], []>} : vector<2x32xbf16>, vector<32x32xbf16>, vector<2x32xf32> -> vector<2x32xf32>
      %125 = arith.truncf %105 : vector<2x32xf32> to vector<2x32xbf16>
      %cst_66 = arith.constant dense<0.000000e+00> : vector<2x32xf32>
      %126 = tpu.matmul %125, %13, %cst_66 {dimension_numbers = #tpu.dot_dimension_numbers<[1], [0], [0], [1], [0, 0, 1, 1], [], []>} : vector<2x32xbf16>, vector<32x32xbf16>, vector<2x32xf32> -> vector<2x32xf32>
      %127 = arith.addf %124, %126 : vector<2x32xf32>
      %128 = vector.broadcast %14 : vector<1x32xf32> to vector<2x32xf32>
      %129 = arith.addf %127, %128 : vector<2x32xf32>
      %130 = math.tanh %129 : vector<2x32xf32>
      %131 = arith.index_cast %42 : i32 to index
      %c0_67 = arith.constant 0 : index
      %c0_68 = arith.constant 0 : index
      %132 = vector.load %arg12[%131, %c0_67, %c0_68] : memref<4x2x32xf32, #tpu.memory_space<vmem>>, vector<1x2x32xf32>
      %133 = vector.shape_cast %132 : vector<1x2x32xf32> to vector<2x32xf32>
      %134 = vector.shape_cast %130 : vector<2x32xf32> to vector<1x2x32xf32>
      tpu.vector_store %arg12[%131, %c0_67, %c0_68], %134 {strides = array<i32>} : memref<4x2x32xf32, #tpu.memory_space<vmem>>, vector<1x2x32xf32>,
      %135 = arith.index_cast %42 : i32 to index
      %c0_69 = arith.constant 0 : index
      %c0_70 = arith.constant 0 : index
      %136 = vector.load %arg13[%135, %c0_69, %c0_70] : memref<4x2x8xf32, #tpu.memory_space<vmem>>, vector<1x2x8xf32>
      %137 = vector.shape_cast %136 : vector<1x2x8xf32> to vector<2x8xf32>
      %138 = vector.shape_cast %118 : vector<2x8xf32> to vector<1x2x8xf32>
      tpu.vector_store %arg13[%135, %c0_69, %c0_70], %138 {strides = array<i32>} : memref<4x2x8xf32, #tpu.memory_space<vmem>>, vector<1x2x8xf32>,
      %139 = arith.truncf %73 : vector<2x32xf32> to vector<2x32xbf16>
      %cst_71 = arith.constant dense<0.000000e+00> : vector<2x128xf32>
      %140 = tpu.matmul %139, %5, %cst_71 {dimension_numbers = #tpu.dot_dimension_numbers<[1], [0], [0], [1], [0, 0, 1, 1], [], []>} : vector<2x32xbf16>, vector<32x128xbf16>, vector<2x128xf32> -> vector<2x128xf32>
      %141 = arith.index_cast %41 : i32 to index
      %c0_72 = arith.constant 0 : index
      %c0_73 = arith.constant 0 : index
      %142 = vector.load %arg2[%141, %c0_72, %c0_73] : memref<4x2x128xf32, #tpu.memory_space<vmem>>, vector<1x2x128xf32>
      %143 = vector.shape_cast %142 : vector<1x2x128xf32> to vector<2x128xf32>
      %144 = arith.addf %143, %140 : vector<2x128xf32>
      %145 = vector.extract_strided_slice %144 {offsets = [0, 0], sizes = [2, 32], strides = [1, 1]} : vector<2x128xf32> to vector<2x32xf32>
      %146 = arith.negf %145 : vector<2x32xf32>
      %147 = math.exp %146 : vector<2x32xf32>
      %cst_74 = arith.constant 1.000000e+00 : f32
      %148 = vector.broadcast %cst_74 : f32 to vector<2x32xf32>
      %149 = arith.addf %148, %147 : vector<2x32xf32>
      %150 = arith.divf %148, %149 : vector<2x32xf32>
      %151 = vector.extract_strided_slice %144 {offsets = [0, 32], sizes = [2, 32], strides = [1, 1]} : vector<2x128xf32> to vector<2x32xf32>
      %152 = arith.negf %151 : vector<2x32xf32>
      %153 = math.exp %152 : vector<2x32xf32>
      %cst_75 = arith.constant 1.000000e+00 : f32
      %154 = vector.broadcast %cst_75 : f32 to vector<2x32xf32>
      %155 = arith.addf %154, %153 : vector<2x32xf32>
      %156 = arith.divf %154, %155 : vector<2x32xf32>
      %157 = vector.extract_strided_slice %144 {offsets = [0, 64], sizes = [2, 32], strides = [1, 1]} : vector<2x128xf32> to vector<2x32xf32>
      %158 = math.tanh %157 : vector<2x32xf32>
      %159 = vector.extract_strided_slice %144 {offsets = [0, 96], sizes = [2, 32], strides = [1, 1]} : vector<2x128xf32> to vector<2x32xf32>
      %160 = arith.negf %159 : vector<2x32xf32>
      %161 = math.exp %160 : vector<2x32xf32>
      %cst_76 = arith.constant 1.000000e+00 : f32
      %162 = vector.broadcast %cst_76 : f32 to vector<2x32xf32>
      %163 = arith.addf %162, %161 : vector<2x32xf32>
      %164 = arith.divf %162, %163 : vector<2x32xf32>
      %165 = arith.mulf %156, %71 : vector<2x32xf32>
      %166 = arith.mulf %150, %158 : vector<2x32xf32>
      %167 = arith.addf %165, %166 : vector<2x32xf32>
      %168 = math.tanh %167 : vector<2x32xf32>
      %169 = arith.mulf %164, %168 : vector<2x32xf32>
      %170 = arith.truncf %105 : vector<2x32xf32> to vector<2x32xbf16>
      %cst_77 = arith.constant dense<0.000000e+00> : vector<2x128xf32>
      %171 = tpu.matmul %170, %7, %cst_77 {dimension_numbers = #tpu.dot_dimension_numbers<[1], [0], [0], [1], [0, 0, 1, 1], [], []>} : vector<2x32xbf16>, vector<32x128xbf16>, vector<2x128xf32> -> vector<2x128xf32>
      %172 = arith.truncf %169 : vector<2x32xf32> to vector<2x32xbf16>
      %cst_78 = arith.constant dense<0.000000e+00> : vector<2x128xf32>
      %173 = tpu.matmul %172, %9, %cst_78 {dimension_numbers = #tpu.dot_dimension_numbers<[1], [0], [0], [1], [0, 0, 1, 1], [], []>} : vector<2x32xbf16>, vector<32x128xbf16>, vector<2x128xf32> -> vector<2x128xf32>
      %174 = arith.addf %173, %171 : vector<2x128xf32>
      %175 = vector.broadcast %11 : vector<1x128xf32> to vector<2x128xf32>
      %176 = arith.addf %174, %175 : vector<2x128xf32>
      %177 = vector.extract_strided_slice %176 {offsets = [0, 0], sizes = [2, 32], strides = [1, 1]} : vector<2x128xf32> to vector<2x32xf32>
      %178 = arith.negf %177 : vector<2x32xf32>
      %179 = math.exp %178 : vector<2x32xf32>
      %cst_79 = arith.constant 1.000000e+00 : f32
      %180 = vector.broadcast %cst_79 : f32 to vector<2x32xf32>
      %181 = arith.addf %180, %179 : vector<2x32xf32>
      %182 = arith.divf %180, %181 : vector<2x32xf32>
      %183 = vector.extract_strided_slice %176 {offsets = [0, 32], sizes = [2, 32], strides = [1, 1]} : vector<2x128xf32> to vector<2x32xf32>
      %184 = arith.negf %183 : vector<2x32xf32>
      %185 = math.exp %184 : vector<2x32xf32>
      %cst_80 = arith.constant 1.000000e+00 : f32
      %186 = vector.broadcast %cst_80 : f32 to vector<2x32xf32>
      %187 = arith.addf %186, %185 : vector<2x32xf32>
      %188 = arith.divf %186, %187 : vector<2x32xf32>
      %189 = vector.extract_strided_slice %176 {offsets = [0, 64], sizes = [2, 32], strides = [1, 1]} : vector<2x128xf32> to vector<2x32xf32>
      %190 = math.tanh %189 : vector<2x32xf32>
      %191 = vector.extract_strided_slice %176 {offsets = [0, 96], sizes = [2, 32], strides = [1, 1]} : vector<2x128xf32> to vector<2x32xf32>
      %192 = arith.negf %191 : vector<2x32xf32>
      %193 = math.exp %192 : vector<2x32xf32>
      %cst_81 = arith.constant 1.000000e+00 : f32
      %194 = vector.broadcast %cst_81 : f32 to vector<2x32xf32>
      %195 = arith.addf %194, %193 : vector<2x32xf32>
      %196 = arith.divf %194, %195 : vector<2x32xf32>
      %197 = arith.mulf %188, %103 : vector<2x32xf32>
      %198 = arith.mulf %182, %190 : vector<2x32xf32>
      %199 = arith.addf %197, %198 : vector<2x32xf32>
      %200 = math.tanh %199 : vector<2x32xf32>
      %201 = arith.mulf %196, %200 : vector<2x32xf32>
      %202 = vector.shape_cast %201 : vector<2x32xf32> to vector<2x1x32xf32>
      %203 = vector.broadcast %202 : vector<2x1x32xf32> to vector<2x8x32xf32>
      %204 = arith.mulf %203, %3 : vector<2x8x32xf32>
      %cst_82 = arith.constant dense<0.000000e+00> : vector<2x8xf32>
      %205 = vector.multi_reduction <add>, %204, %cst_82 [2] : vector<2x8x32xf32> to vector<2x8xf32>
      %cst_83 = arith.constant dense<0xFF800000> : vector<2xf32>
      %206 = vector.multi_reduction <maximumf>, %205, %cst_83 [1] : vector<2x8xf32> to vector<2xf32>
      %207 = vector.shape_cast %206 : vector<2xf32> to vector<2x1xf32>
      %208 = vector.broadcast %207 : vector<2x1xf32> to vector<2x8xf32>
      %209 = arith.subf %205, %208 : vector<2x8xf32>
      %210 = math.exp %209 : vector<2x8xf32>
      %cst_84 = arith.constant dense<0.000000e+00> : vector<2xf32>
      %211 = vector.multi_reduction <add>, %210, %cst_84 [1] : vector<2x8xf32> to vector<2xf32>
      %212 = vector.shape_cast %211 : vector<2xf32> to vector<2x1xf32>
      %213 = vector.broadcast %212 : vector<2x1xf32> to vector<2x8xf32>
      %214 = arith.divf %210, %213 : vector<2x8xf32>
      %215 = vector.shape_cast %214 : vector<2x8xf32> to vector<2x8x1xf32>
      %216 = vector.broadcast %215 : vector<2x8x1xf32> to vector<2x8x32xf32>
      %217 = arith.mulf %216, %3 : vector<2x8x32xf32>
      %cst_85 = arith.constant dense<0.000000e+00> : vector<2x32xf32>
      %218 = vector.multi_reduction <add>, %217, %cst_85 [1] : vector<2x8x32xf32> to vector<2x32xf32>
      %219 = arith.truncf %218 : vector<2x32xf32> to vector<2x32xbf16>
      %cst_86 = arith.constant dense<0.000000e+00> : vector<2x32xf32>
      %220 = tpu.matmul %219, %12, %cst_86 {dimension_numbers = #tpu.dot_dimension_numbers<[1], [0], [0], [1], [0, 0, 1, 1], [], []>} : vector<2x32xbf16>, vector<32x32xbf16>, vector<2x32xf32> -> vector<2x32xf32>
      %221 = arith.truncf %201 : vector<2x32xf32> to vector<2x32xbf16>
      %cst_87 = arith.constant dense<0.000000e+00> : vector<2x32xf32>
      %222 = tpu.matmul %221, %13, %cst_87 {dimension_numbers = #tpu.dot_dimension_numbers<[1], [0], [0], [1], [0, 0, 1, 1], [], []>} : vector<2x32xbf16>, vector<32x32xbf16>, vector<2x32xf32> -> vector<2x32xf32>
      %223 = arith.addf %220, %222 : vector<2x32xf32>
      %224 = vector.broadcast %14 : vector<1x32xf32> to vector<2x32xf32>
      %225 = arith.addf %223, %224 : vector<2x32xf32>
      %226 = math.tanh %225 : vector<2x32xf32>
      %227 = arith.index_cast %41 : i32 to index
      %c0_88 = arith.constant 0 : index
      %c0_89 = arith.constant 0 : index
      %228 = vector.load %arg12[%227, %c0_88, %c0_89] : memref<4x2x32xf32, #tpu.memory_space<vmem>>, vector<1x2x32xf32>
      %229 = vector.shape_cast %228 : vector<1x2x32xf32> to vector<2x32xf32>
      %230 = vector.shape_cast %226 : vector<2x32xf32> to vector<1x2x32xf32>
      tpu.vector_store %arg12[%227, %c0_88, %c0_89], %230 {strides = array<i32>} : memref<4x2x32xf32, #tpu.memory_space<vmem>>, vector<1x2x32xf32>,
      %231 = arith.index_cast %41 : i32 to index
      %c0_90 = arith.constant 0 : index
      %c0_91 = arith.constant 0 : index
      %232 = vector.load %arg13[%231, %c0_90, %c0_91] : memref<4x2x8xf32, #tpu.memory_space<vmem>>, vector<1x2x8xf32>
      %233 = vector.shape_cast %232 : vector<1x2x8xf32> to vector<2x8xf32>
      %234 = vector.shape_cast %214 : vector<2x8xf32> to vector<1x2x8xf32>
      tpu.vector_store %arg13[%231, %c0_90, %c0_91], %234 {strides = array<i32>} : memref<4x2x8xf32, #tpu.memory_space<vmem>>, vector<1x2x8xf32>,
      scf.yield %169, %201, %167, %199 : vector<2x32xf32>, vector<2x32xf32>, vector<2x32xf32>, vector<2x32xf32>
    }
    %c2_i32_33 = arith.constant 2 : i32
    %c0_34 = arith.constant 0 : index
    %c0_35 = arith.constant 0 : index
    %c0_36 = arith.constant 0 : index
    %25 = vector.load %arg16[%c0_34, %c0_35, %c0_36] : memref<2x2x32xf32, #tpu.memory_space<vmem>>, vector<1x2x32xf32>
    %26 = vector.shape_cast %25 : vector<1x2x32xf32> to vector<2x32xf32>
    %27 = vector.shape_cast %24#0 : vector<2x32xf32> to vector<1x2x32xf32>
    tpu.vector_store %arg16[%c0_34, %c0_35, %c0_36], %27 {strides = array<i32>} : memref<2x2x32xf32, #tpu.memory_space<vmem>>, vector<1x2x32xf32>,
    %c0_37 = arith.constant 0 : index
    %c0_38 = arith.constant 0 : index
    %c0_39 = arith.constant 0 : index
    %28 = vector.load %arg17[%c0_37, %c0_38, %c0_39] : memref<2x2x32xf32, #tpu.memory_space<vmem>>, vector<1x2x32xf32>
    %29 = vector.shape_cast %28 : vector<1x2x32xf32> to vector<2x32xf32>
    %30 = vector.shape_cast %24#2 : vector<2x32xf32> to vector<1x2x32xf32>
    tpu.vector_store %arg17[%c0_37, %c0_38, %c0_39], %30 {strides = array<i32>} : memref<2x2x32xf32, #tpu.memory_space<vmem>>, vector<1x2x32xf32>,
    %c1_40 = arith.constant 1 : index
    %c0_41 = arith.constant 0 : index
    %c0_42 = arith.constant 0 : index
    %31 = vector.load %arg16[%c1_40, %c0_41, %c0_42] : memref<2x2x32xf32, #tpu.memory_space<vmem>>, vector<1x2x32xf32>
    %32 = vector.shape_cast %31 : vector<1x2x32xf32> to vector<2x32xf32>
    %33 = vector.shape_cast %24#1 : vector<2x32xf32> to vector<1x2x32xf32>
    tpu.vector_store %arg16[%c1_40, %c0_41, %c0_42], %33 {strides = array<i32>} : memref<2x2x32xf32, #tpu.memory_space<vmem>>, vector<1x2x32xf32>,
    %c1_43 = arith.constant 1 : index
    %c0_44 = arith.constant 0 : index
    %c0_45 = arith.constant 0 : index
    %34 = vector.load %arg17[%c1_43, %c0_44, %c0_45] : memref<2x2x32xf32, #tpu.memory_space<vmem>>, vector<1x2x32xf32>
    %35 = vector.shape_cast %34 : vector<1x2x32xf32> to vector<2x32xf32>
    %36 = vector.shape_cast %24#3 : vector<2x32xf32> to vector<1x2x32xf32>
    tpu.vector_store %arg17[%c1_43, %c0_44, %c0_45], %36 {strides = array<i32>} : memref<2x2x32xf32, #tpu.memory_space<vmem>>, vector<1x2x32xf32>,
    %c1_i32_46 = arith.constant 1 : i32
    %37 = arith.cmpi eq, %arg1, %c1_i32_46 : i32
    %38 = arith.extui %37 : i1 to i32
    %c0_i32_47 = arith.constant 0 : i32
    %39 = arith.cmpi ne, %38, %c0_i32_47 : i32
    scf.if %39 {
      %c0_48 = arith.constant 0 : index
      %c0_49 = arith.constant 0 : index
      %c0_50 = arith.constant 0 : index
      %40 = vector.load %arg16[%c0_48, %c0_49, %c0_50] : memref<2x2x32xf32, #tpu.memory_space<vmem>>, vector<2x2x32xf32>
      %c0_51 = arith.constant 0 : index
      %c0_52 = arith.constant 0 : index
      %c0_53 = arith.constant 0 : index
      %41 = vector.load %arg14[%c0_51, %c0_52, %c0_53] : memref<2x2x32xf32, #tpu.memory_space<vmem>>, vector<2x2x32xf32>
      tpu.vector_store %arg14[%c0_51, %c0_52, %c0_53], %40 {strides = array<i32>} : memref<2x2x32xf32, #tpu.memory_space<vmem>>, vector<2x2x32xf32>,
      %c0_54 = arith.constant 0 : index
      %c0_55 = arith.constant 0 : index
      %c0_56 = arith.constant 0 : index
      %42 = vector.load %arg17[%c0_54, %c0_55, %c0_56] : memref<2x2x32xf32, #tpu.memory_space<vmem>>, vector<2x2x32xf32>
      %c0_57 = arith.constant 0 : index
      %c0_58 = arith.constant 0 : index
      %c0_59 = arith.constant 0 : index
      %43 = vector.load %arg15[%c0_57, %c0_58, %c0_59] : memref<2x2x32xf32, #tpu.memory_space<vmem>>, vector<2x2x32xf32>
      tpu.vector_store %arg15[%c0_57, %c0_58, %c0_59], %42 {strides = array<i32>} : memref<2x2x32xf32, #tpu.memory_space<vmem>>, vector<2x2x32xf32>,
    } else {
    }
    return
  }
  func.func @transform_0(%arg0: i32, %arg1: i32) -> (i32, i32, i32) {
    %c0_i32 = arith.constant 0 : i32
    %c0_i32_0 = arith.constant 0 : i32
    return %arg1, %arg0, %c0_i32 : i32, i32, i32
  }
  func.func @transform_1(%arg0: i32, %arg1: i32) -> (i32, i32, i32) {
    %c0_i32 = arith.constant 0 : i32
    %c0_i32_0 = arith.constant 0 : i32
    %c0_i32_1 = arith.constant 0 : i32
    return %arg0, %c0_i32, %c0_i32_0 : i32, i32, i32
  }
  func.func @transform_2(%arg0: i32, %arg1: i32) -> (i32, i32, i32) {
    %c0_i32 = arith.constant 0 : i32
    %c0_i32_0 = arith.constant 0 : i32
    %c0_i32_1 = arith.constant 0 : i32
    return %c0_i32, %arg0, %c0_i32_0 : i32, i32, i32
  }
  func.func @transform_3(%arg0: i32, %arg1: i32) -> (i32, i32, i32) {
    %c0_i32 = arith.constant 0 : i32
    %c0_i32_0 = arith.constant 0 : i32
    %c0_i32_1 = arith.constant 0 : i32
    return %c0_i32, %arg0, %c0_i32_0 : i32, i32, i32
  }
  func.func @transform_4(%arg0: i32, %arg1: i32) -> (i32, i32, i32) {
    %c0_i32 = arith.constant 0 : i32
    %c0_i32_0 = arith.constant 0 : i32
    %c0_i32_1 = arith.constant 0 : i32
    %c0_i32_2 = arith.constant 0 : i32
    return %c0_i32, %c0_i32_0, %c0_i32_1 : i32, i32, i32
  }
  func.func @transform_5(%arg0: i32, %arg1: i32) -> (i32, i32, i32) {
    %c0_i32 = arith.constant 0 : i32
    %c0_i32_0 = arith.constant 0 : i32
    %c0_i32_1 = arith.constant 0 : i32
    %c0_i32_2 = arith.constant 0 : i32
    return %c0_i32, %c0_i32_0, %c0_i32_1 : i32, i32, i32
  }
  func.func @transform_6(%arg0: i32, %arg1: i32) -> (i32, i32, i32) {
    %c0_i32 = arith.constant 0 : i32
    %c0_i32_0 = arith.constant 0 : i32
    %c0_i32_1 = arith.constant 0 : i32
    %c0_i32_2 = arith.constant 0 : i32
    return %c0_i32, %c0_i32_0, %c0_i32_1 : i32, i32, i32
  }
  func.func @transform_7(%arg0: i32, %arg1: i32) -> (i32, i32) {
    %c0_i32 = arith.constant 0 : i32
    %c0_i32_0 = arith.constant 0 : i32
    %c0_i32_1 = arith.constant 0 : i32
    return %c0_i32, %c0_i32_0 : i32, i32
  }
  func.func @transform_8(%arg0: i32, %arg1: i32) -> (i32, i32) {
    %c0_i32 = arith.constant 0 : i32
    %c0_i32_0 = arith.constant 0 : i32
    %c0_i32_1 = arith.constant 0 : i32
    return %c0_i32, %c0_i32_0 : i32, i32
  }
  func.func @transform_9(%arg0: i32, %arg1: i32) -> (i32, i32) {
    %c0_i32 = arith.constant 0 : i32
    %c0_i32_0 = arith.constant 0 : i32
    %c0_i32_1 = arith.constant 0 : i32
    return %c0_i32, %c0_i32_0 : i32, i32
  }
  func.func @transform_10(%arg0: i32, %arg1: i32) -> (i32, i32, i32) {
    %c0_i32 = arith.constant 0 : i32
    %c0_i32_0 = arith.constant 0 : i32
    return %arg1, %arg0, %c0_i32 : i32, i32, i32
  }
  func.func @transform_11(%arg0: i32, %arg1: i32) -> (i32, i32, i32) {
    %c0_i32 = arith.constant 0 : i32
    %c0_i32_0 = arith.constant 0 : i32
    return %arg1, %arg0, %c0_i32 : i32, i32, i32
  }
  func.func @transform_12(%arg0: i32, %arg1: i32) -> (i32, i32, i32) {
    %c0_i32 = arith.constant 0 : i32
    %c0_i32_0 = arith.constant 0 : i32
    %c0_i32_1 = arith.constant 0 : i32
    return %c0_i32, %arg0, %c0_i32_0 : i32, i32, i32
  }
  func.func @transform_13(%arg0: i32, %arg1: i32) -> (i32, i32, i32) {
    %c0_i32 = arith.constant 0 : i32
    %c0_i32_0 = arith.constant 0 : i32
    %c0_i32_1 = arith.constant 0 : i32
    return %c0_i32, %arg0, %c0_i32_0 : i32, i32, i32
  }
}

module attributes {stable_mosaic.version = 11 : i64} {
  func.func @_logp_normalize_kernel(%arg0: i32, %arg1: i32, %arg2: memref<16x64xf32, #tpu.memory_space<vmem>>, %arg3: memref<16x1xf32, #tpu.memory_space<vmem>>, %arg4: memref<16x64xf32, #tpu.memory_space<vmem>>) attributes {dimension_semantics = [#tpu.dimension_semantics<parallel>, #tpu.dimension_semantics<arbitrary>], iteration_bounds = array<i64: 1, 1>, scalar_prefetch = 0 : i64, scratch_operands = 0 : i64, tpu.core_type = #tpu.core_type<tc>, window_params = [{transform_indices = @transform_0, window_bounds = array<i64: 16, 64>}, {transform_indices = @transform_1, window_bounds = array<i64: 16, 1>}, {transform_indices = @transform_2, window_bounds = array<i64: 16, 64>}]} {
    %c0 = arith.constant 0 : index
    %c0_0 = arith.constant 0 : index
    %0 = vector.load %arg2[%c0, %c0_0] : memref<16x64xf32, #tpu.memory_space<vmem>>, vector<16x64xf32>
    %c0_1 = arith.constant 0 : index
    %c0_2 = arith.constant 0 : index
    %1 = vector.load %arg3[%c0_1, %c0_2] : memref<16x1xf32, #tpu.memory_space<vmem>>, vector<16x1xf32>
    %2 = vector.broadcast %1 : vector<16x1xf32> to vector<16x64xf32>
    %3 = arith.subf %0, %2 : vector<16x64xf32>
    %c0_3 = arith.constant 0 : index
    %c0_4 = arith.constant 0 : index
    %4 = vector.load %arg4[%c0_3, %c0_4] : memref<16x64xf32, #tpu.memory_space<vmem>>, vector<16x64xf32>
    tpu.vector_store %arg4[%c0_3, %c0_4], %3 {strides = array<i32>} : memref<16x64xf32, #tpu.memory_space<vmem>>, vector<16x64xf32>,
    return
  }
  func.func @transform_0(%arg0: i32, %arg1: i32) -> (i32, i32) {
    %c0_i32 = arith.constant 0 : i32
    return %arg0, %arg1 : i32, i32
  }
  func.func @transform_1(%arg0: i32, %arg1: i32) -> (i32, i32) {
    %c0_i32 = arith.constant 0 : i32
    %c0_i32_0 = arith.constant 0 : i32
    return %arg0, %c0_i32 : i32, i32
  }
  func.func @transform_2(%arg0: i32, %arg1: i32) -> (i32, i32) {
    %c0_i32 = arith.constant 0 : i32
    return %arg0, %arg1 : i32, i32
  }
}

module attributes {stable_mosaic.version = 11 : i64} {
  func.func @_proj_pass1_kernel(%arg0: i32, %arg1: i32, %arg2: memref<16x32xbf16, #tpu.memory_space<vmem>>, %arg3: memref<32x64xbf16, #tpu.memory_space<vmem>>, %arg4: memref<1x64xf32, #tpu.memory_space<vmem>>, %arg5: memref<16x64xf32, #tpu.memory_space<vmem>>, %arg6: memref<16x1xf32, #tpu.memory_space<vmem>>, %arg7: memref<16x1xf32, #tpu.memory_space<vmem>>, %arg8: memref<16x1xf32, #tpu.memory_space<vmem>>) attributes {dimension_semantics = [#tpu.dimension_semantics<parallel>, #tpu.dimension_semantics<arbitrary>], iteration_bounds = array<i64: 1, 1>, scalar_prefetch = 0 : i64, scratch_operands = 2 : i64, tpu.core_type = #tpu.core_type<tc>, window_params = [{transform_indices = @transform_0, window_bounds = array<i64: 16, 32>}, {transform_indices = @transform_1, window_bounds = array<i64: 32, 64>}, {transform_indices = @transform_2, window_bounds = array<i64: 1, 64>}, {transform_indices = @transform_3, window_bounds = array<i64: 16, 64>}, {transform_indices = @transform_4, window_bounds = array<i64: 16, 1>}]} {
    %c0_i32 = arith.constant 0 : i32
    %0 = arith.cmpi eq, %arg1, %c0_i32 : i32
    %1 = arith.extui %0 : i1 to i32
    %c0_i32_0 = arith.constant 0 : i32
    %2 = arith.cmpi ne, %1, %c0_i32_0 : i32
    scf.if %2 {
      %cst_20 = arith.constant -1.000000e+30 : f32
      %29 = vector.broadcast %cst_20 : f32 to vector<16x1xf32>
      %c0_21 = arith.constant 0 : index
      %c0_22 = arith.constant 0 : index
      %30 = vector.load %arg7[%c0_21, %c0_22] : memref<16x1xf32, #tpu.memory_space<vmem>>, vector<16x1xf32>
      tpu.vector_store %arg7[%c0_21, %c0_22], %29 {strides = array<i32>} : memref<16x1xf32, #tpu.memory_space<vmem>>, vector<16x1xf32>,
      %cst_23 = arith.constant 0.000000e+00 : f32
      %31 = vector.broadcast %cst_23 : f32 to vector<16x1xf32>
      %c0_24 = arith.constant 0 : index
      %c0_25 = arith.constant 0 : index
      %32 = vector.load %arg8[%c0_24, %c0_25] : memref<16x1xf32, #tpu.memory_space<vmem>>, vector<16x1xf32>
      tpu.vector_store %arg8[%c0_24, %c0_25], %31 {strides = array<i32>} : memref<16x1xf32, #tpu.memory_space<vmem>>, vector<16x1xf32>,
    } else {
    }
    %c0 = arith.constant 0 : index
    %c0_1 = arith.constant 0 : index
    %3 = vector.load %arg2[%c0, %c0_1] : memref<16x32xbf16, #tpu.memory_space<vmem>>, vector<16x32xbf16>
    %c0_2 = arith.constant 0 : index
    %c0_3 = arith.constant 0 : index
    %4 = vector.load %arg3[%c0_2, %c0_3] : memref<32x64xbf16, #tpu.memory_space<vmem>>, vector<32x64xbf16>
    %cst = arith.constant dense<0.000000e+00> : vector<16x64xf32>
    %5 = tpu.matmul %3, %4, %cst {dimension_numbers = #tpu.dot_dimension_numbers<[1], [0], [0], [1], [0, 0, 1, 1], [], []>} : vector<16x32xbf16>, vector<32x64xbf16>, vector<16x64xf32> -> vector<16x64xf32>
    %c0_4 = arith.constant 0 : index
    %c0_5 = arith.constant 0 : index
    %6 = vector.load %arg4[%c0_4, %c0_5] : memref<1x64xf32, #tpu.memory_space<vmem>>, vector<1x64xf32>
    %7 = vector.broadcast %6 : vector<1x64xf32> to vector<16x64xf32>
    %8 = arith.addf %5, %7 : vector<16x64xf32>
    %c0_6 = arith.constant 0 : index
    %c0_7 = arith.constant 0 : index
    %9 = vector.load %arg5[%c0_6, %c0_7] : memref<16x64xf32, #tpu.memory_space<vmem>>, vector<16x64xf32>
    tpu.vector_store %arg5[%c0_6, %c0_7], %8 {strides = array<i32>} : memref<16x64xf32, #tpu.memory_space<vmem>>, vector<16x64xf32>,
    %c0_8 = arith.constant 0 : index
    %c0_9 = arith.constant 0 : index
    %10 = vector.load %arg7[%c0_8, %c0_9] : memref<16x1xf32, #tpu.memory_space<vmem>>, vector<16x1xf32>
    %cst_10 = arith.constant dense<0xFF800000> : vector<16xf32>
    %11 = vector.multi_reduction <maximumf>, %8, %cst_10 [1] : vector<16x64xf32> to vector<16xf32>
    %12 = vector.shape_cast %11 : vector<16xf32> to vector<16x1xf32>
    %13 = arith.maximumf %10, %12 : vector<16x1xf32>
    %c0_11 = arith.constant 0 : index
    %c0_12 = arith.constant 0 : index
    %14 = vector.load %arg8[%c0_11, %c0_12] : memref<16x1xf32, #tpu.memory_space<vmem>>, vector<16x1xf32>
    %15 = arith.subf %10, %13 : vector<16x1xf32>
    %16 = math.exp %15 : vector<16x1xf32>
    %17 = arith.mulf %14, %16 : vector<16x1xf32>
    %18 = vector.broadcast %13 : vector<16x1xf32> to vector<16x64xf32>
    %19 = arith.subf %8, %18 : vector<16x64xf32>
    %20 = math.exp %19 : vector<16x64xf32>
    %cst_13 = arith.constant dense<0.000000e+00> : vector<16xf32>
    %21 = vector.multi_reduction <add>, %20, %cst_13 [1] : vector<16x64xf32> to vector<16xf32>
    %22 = vector.shape_cast %21 : vector<16xf32> to vector<16x1xf32>
    %23 = arith.addf %17, %22 : vector<16x1xf32>
    %c0_14 = arith.constant 0 : index
    %c0_15 = arith.constant 0 : index
    %24 = vector.load %arg8[%c0_14, %c0_15] : memref<16x1xf32, #tpu.memory_space<vmem>>, vector<16x1xf32>
    tpu.vector_store %arg8[%c0_14, %c0_15], %23 {strides = array<i32>} : memref<16x1xf32, #tpu.memory_space<vmem>>, vector<16x1xf32>,
    %c0_16 = arith.constant 0 : index
    %c0_17 = arith.constant 0 : index
    %25 = vector.load %arg7[%c0_16, %c0_17] : memref<16x1xf32, #tpu.memory_space<vmem>>, vector<16x1xf32>
    tpu.vector_store %arg7[%c0_16, %c0_17], %13 {strides = array<i32>} : memref<16x1xf32, #tpu.memory_space<vmem>>, vector<16x1xf32>,
    %c0_i32_18 = arith.constant 0 : i32
    %26 = arith.cmpi eq, %arg1, %c0_i32_18 : i32
    %27 = arith.extui %26 : i1 to i32
    %c0_i32_19 = arith.constant 0 : i32
    %28 = arith.cmpi ne, %27, %c0_i32_19 : i32
    scf.if %28 {
      %c0_20 = arith.constant 0 : index
      %c0_21 = arith.constant 0 : index
      %29 = vector.load %arg7[%c0_20, %c0_21] : memref<16x1xf32, #tpu.memory_space<vmem>>, vector<16x1xf32>
      %c0_22 = arith.constant 0 : index
      %c0_23 = arith.constant 0 : index
      %30 = vector.load %arg8[%c0_22, %c0_23] : memref<16x1xf32, #tpu.memory_space<vmem>>, vector<16x1xf32>
      %31 = math.log %30 : vector<16x1xf32>
      %32 = arith.addf %29, %31 : vector<16x1xf32>
      %c0_24 = arith.constant 0 : index
      %c0_25 = arith.constant 0 : index
      %33 = vector.load %arg6[%c0_24, %c0_25] : memref<16x1xf32, #tpu.memory_space<vmem>>, vector<16x1xf32>
      tpu.vector_store %arg6[%c0_24, %c0_25], %32 {strides = array<i32>} : memref<16x1xf32, #tpu.memory_space<vmem>>, vector<16x1xf32>,
    } else {
    }
    return
  }
  func.func @transform_0(%arg0: i32, %arg1: i32) -> (i32, i32) {
    %c0_i32 = arith.constant 0 : i32
    %c0_i32_0 = arith.constant 0 : i32
    return %arg0, %c0_i32 : i32, i32
  }
  func.func @transform_1(%arg0: i32, %arg1: i32) -> (i32, i32) {
    %c0_i32 = arith.constant 0 : i32
    %c0_i32_0 = arith.constant 0 : i32
    return %c0_i32, %arg1 : i32, i32
  }
  func.func @transform_2(%arg0: i32, %arg1: i32) -> (i32, i32) {
    %c0_i32 = arith.constant 0 : i32
    %c0_i32_0 = arith.constant 0 : i32
    return %c0_i32, %arg1 : i32, i32
  }
  func.func @transform_3(%arg0: i32, %arg1: i32) -> (i32, i32) {
    %c0_i32 = arith.constant 0 : i32
    return %arg0, %arg1 : i32, i32
  }
  func.func @transform_4(%arg0: i32, %arg1: i32) -> (i32, i32) {
    %c0_i32 = arith.constant 0 : i32
    %c0_i32_0 = arith.constant 0 : i32
    return %arg0, %c0_i32 : i32, i32
  }
}

</mosaic_0001>

<llo_original>
// kernel: dec_forward_train.7
$region0: #{dec_forward_train.7}
  #allocation0 [shape = 'u32[]', space=smem, size = 0x4, offset = 0x4, fixed_abs, tag = 'smem constant byte address 0x4 - core index']
  #allocation1 [shape = 'u32[144,128]{1,0:T(1,128)}', space=vmem, size = 0x12000, scoped, tag = 'internal scratch']
  %s0 = inlined_call_operand.vmem [shape: f32[16,64], index: 0, kind: input, shape index: {}]
  %s1 = inlined_call_operand.vmem [shape: f32[16,1], index: 1, kind: input, shape index: {}]
  %s2 = inlined_call_operand.vmem [shape: f32[16,64], index: 2, kind: output, shape index: {}]
  %s3 = sld [smem:[#allocation0]]
  $region18: #{dec_forward_train.7} parent=0
    _
  %s5 = ssub.s32 1, %s3
  %s6 = scalar_select 0, %s5, %s3
  // Predicated region
  $region2: #{dec_forward_train.7} parent=0 // pred_check
    _
  $region3: #{dec_forward_train.7} parent=0 // pred_check_branch
    %8 = sbr.rel (0) target = $region5
  $region4: #{dec_forward_train.7} parent=0 // pred_region
    _
  $region5: #{dec_forward_train.7} parent=0 // pred_fallthru
    _
  // Predicated region
  $region6: #{dec_forward_train.7} parent=0 // pred_check
    _
  $region7: #{dec_forward_train.7} parent=0 // pred_check_branch
    %10 = sbr.rel (0) target = $region9
  $region8: #{dec_forward_train.7} parent=0 // pred_region
    _
  $region9: #{dec_forward_train.7} parent=0 // pred_fallthru
    _
  %v11 = vld [vmem:[%s0] sm:$0xff]
  %v12 = vld [vmem:[%s0 + $0x8] sm:$0xff]
  %v13 = vld [vmem:[%s1] sm:$0xff]
  %v14 = vld [vmem:[%s1 + $0x8] sm:$0xff]
  %16 = vset.pattern.permute.xlu0 0
  %17 = vperm.xlu0 %16, %v13
  %v18 = vpop.permute.xlu0 %17
  %21 = vset.pattern.permute.xlu0 0
  %22 = vperm.xlu0 %21, %v14
  %v23 = vpop.permute.xlu0 %22
  %v25 = vsub.f32 %v11, %v18
  %v26 = vsub.f32 %v12, %v23
  %vm27 = vcmask 523264
  %28 = vst.msk [vmem:[%s2] sm:$0xff] %vm27, %v25
  %29 = vst.msk [vmem:[%s2 + $0x8] sm:$0xff] %vm27, %v26
  // Predicated region
  $region10: #{dec_forward_train.7} parent=0 // pred_check
    _
  $region11: #{dec_forward_train.7} parent=0 // pred_check_branch
    %31 = sbr.rel (0) target = $region13
  $region12: #{dec_forward_train.7} parent=0 // pred_region
    _
  $region13: #{dec_forward_train.7} parent=0 // pred_fallthru
    _
  // Predicated region
  $region14: #{dec_forward_train.7} parent=0 // pred_check
    _
  $region15: #{dec_forward_train.7} parent=0 // pred_check_branch
    %33 = sbr.rel (0) target = $region17
  $region16: #{dec_forward_train.7} parent=0 // pred_region
    _
  $region17: #{dec_forward_train.7} parent=0 // pred_fallthru
    _

// kernel: dec_forward_train.4
$region0: #{dec_forward_train.4}
  #allocation0 [shape = 'u32[]', space=smem, size = 0x4, offset = 0x4, fixed_abs, tag = 'smem constant byte address 0x4 - core index']
  #allocation1 [shape = 'u32[144,128]{1,0:T(1,128)}', space=vmem, size = 0x12000, scoped, tag = 'internal scratch']
  %s0 = inlined_call_operand.vmem [shape: bf16[16,24], index: 0, kind: input, shape index: {}]
  %s1 = inlined_call_operand.vmem [shape: bf16[24,128], index: 1, kind: input, shape index: {}]
  %s2 = inlined_call_operand.vmem [shape: f32[1,128], index: 2, kind: input, shape index: {}]
  %s3 = inlined_call_operand.vmem [shape: f32[16,128], index: 3, kind: output, shape index: {}]
  %s4 = sld [smem:[#allocation0]]
  $region22: #{dec_forward_train.4} parent=0
    _
  %s6 = ssub.s32 1, %s4
  %s7 = scalar_select 0, %s6, %s4
  // Predicated region
  $region2: #{dec_forward_train.4} parent=0 // pred_check
    _
  $region3: #{dec_forward_train.4} parent=0 // pred_check_branch
    %9 = sbr.rel (0) target = $region5
  $region4: #{dec_forward_train.4} parent=0 // pred_region
    _
  $region5: #{dec_forward_train.4} parent=0 // pred_fallthru
    _
  // Predicated region
  $region6: #{dec_forward_train.4} parent=0 // pred_check
    _
  $region7: #{dec_forward_train.4} parent=0 // pred_check_branch
    %11 = sbr.rel (0) target = $region9
  $region8: #{dec_forward_train.4} parent=0 // pred_region
    _
  $region9: #{dec_forward_train.4} parent=0 // pred_fallthru
    _
  // Predicated region
  $region10: #{dec_forward_train.4} parent=0 // pred_check
    _
  $region11: #{dec_forward_train.4} parent=0 // pred_check_branch
    %13 = sbr.rel (0) target = $region13
  $region12: #{dec_forward_train.4} parent=0 // pred_region
    _
  $region13: #{dec_forward_train.4} parent=0 // pred_fallthru
    _
  %v15 = vld [vmem:[%s0] sm:$0xf]
  %v16 = vld [vmem:[%s0 + $0x4] sm:$0xf]
  %v17 = vld [vmem:[%s1] sm:$0xf]
  %v18 = vld [vmem:[%s1 + $0x4] sm:$0xf]
  %v19 = vld [vmem:[%s1 + $0x8] sm:$0xf]
  %v20 = vld [vmem:[%s2] sm:$0x1]
  %v22 = vlaneseq
  %v23 = vshrl.u32 %v22, 7
  %v24 = vsub.s32 0, %v23
  %v25 = vrot.slane %v20, %v24
  %v29 = vunpack.c.l.b16 %v15
  %v30 = vunpack.c.l.b16 %v16
  %v31 = vpack.c.b16 %v30, %v29
  %v35 = vunpack.c.l.b16 %v17
  %v36 = vunpack.c.l.b16 %v18
  %v37 = vunpack.c.l.b16 %v19
  %v38 = vpack.c.b16 %v36, %v35
  %v39 = vpack.c.b16 %v37, %v37
  %vm41 = vcmask 195584
  %v43 = vsel %vm41, %v31, 0
  %vm45 = vcmask 1043456
  %v47 = vsel %vm45, %v39, 0
  %49 = vmatprep.subr.bf16.mxu0 0
  %50 = vmatpush1.bf16.msra.mxu0 %v38
  %51 = vmatprep.subr.bf16.mxu0 0
  %52 = vmatpush1.bf16.msra.mxu0 %v47
  %53 = vmatprep.subr.bf16.mxu0 0
  %54 = vmatpush1.bf16.msra.mxu0 0
  %55 = vmatprep.subr.bf16.mxu0 0
  %56 = vmatpush1.bf16.msra.mxu0 0
  %57 = vmatprep.subr.bf16.mxu0 0
  %58 = vmatpush1.bf16.msra.mxu0 0
  %59 = vmatprep.subr.bf16.mxu0 0
  %60 = vmatpush1.bf16.msra.mxu0 0
  %61 = vmatprep.subr.bf16.mxu0 0
  %62 = vmatpush1.bf16.msra.mxu0 0
  %63 = vmatprep.subr.bf16.mxu0 0
  %64 = vmatpush1.bf16.msra.mxu0 0
  %65 = vmatprep.subr.bf16.mxu0 0
  %66 = vmatpush1.bf16.msra.mxu0 0
  %67 = vmatprep.subr.bf16.mxu0 0
  %68 = vmatpush1.bf16.msra.mxu0 0
  %69 = vmatprep.subr.bf16.mxu0 0
  %70 = vmatpush1.bf16.msra.mxu0 0
  %71 = vmatprep.subr.bf16.mxu0 0
  %72 = vmatpush1.bf16.msra.mxu0 0
  %73 = vmatprep.subr.bf16.mxu0 0
  %74 = vmatpush1.bf16.msra.mxu0 0
  %75 = vmatprep.subr.bf16.mxu0 0
  %76 = vmatpush1.bf16.msra.mxu0 0
  %77 = vmatprep.subr.bf16.mxu0 0
  %78 = vmatpush1.bf16.msra.mxu0 0
  %79 = vmatprep.subr.bf16.mxu0 0
  %80 = vmatpush1.bf16.msra.mxu0 0
  %81 = vmatprep.mubr.bf16.mxu0 0
  %82 = vmatmul.mubr.bf16.gmra.mrb[0].mxu0 %v43
  %v83 = vpop.f32.mrb[0].mxu0
  %v84 = vadd.f32 %v25, %v83
  %v85 = vpop.f32.mrb[0].mxu0
  %v86 = vpop.f32.mrb[0].mxu0
  %v87 = vadd.f32 %v25, %v86
  %v88 = vpop.f32.mrb[0].mxu0
  %89 = vdwg.mxu0
  %90 = vst [vmem:[%s3] sm:$0xff] %v84
  %91 = vst [vmem:[%s3 + $0x8] sm:$0xff] %v87
  // Predicated region
  $region14: #{dec_forward_train.4} parent=0 // pred_check
    _
  $region15: #{dec_forward_train.4} parent=0 // pred_check_branch
    %93 = sbr.rel (0) target = $region17
  $region16: #{dec_forward_train.4} parent=0 // pred_region
    _
  $region17: #{dec_forward_train.4} parent=0 // pred_fallthru
    _
  // Predicated region
  $region18: #{dec_forward_train.4} parent=0 // pred_check
    _
  $region19: #{dec_forward_train.4} parent=0 // pred_check_branch
    %95 = sbr.rel (0) target = $region21
  $region20: #{dec_forward_train.4} parent=0 // pred_region
    _
  $region21: #{dec_forward_train.4} parent=0 // pred_fallthru
    _

// kernel: dec_forward_train.6
$region0: #{dec_forward_train.6}
  #allocation0 [shape = 'u32[]', space=smem, size = 0x4, offset = 0x4, fixed_abs, tag = 'smem constant byte address 0x4 - core index']
  #allocation1 [shape = 'u32[144,128]{1,0:T(1,128)}', space=vmem, size = 0x12000, scoped, tag = 'internal scratch']
  #allocation2 [shape = 'f32[16,1]{1,0:T(8,128)}', space=vmem, size = 0x2000, scoped, tag = 'scratch operand']
  #allocation3 [shape = 'f32[16,1]{1,0:T(8,128)}', space=vmem, size = 0x2000, scoped, tag = 'scratch operand']
  %s0 = inlined_call_operand.vmem [shape: bf16[16,32], index: 0, kind: input, shape index: {}]
  %s1 = inlined_call_operand.vmem [shape: bf16[32,64], index: 1, kind: input, shape index: {}]
  %s2 = inlined_call_operand.vmem [shape: f32[1,64], index: 2, kind: input, shape index: {}]
  %s3 = inlined_call_operand.vmem [shape: f32[16,64], index: 3, kind: output, shape index: {0}]
  %s4 = inlined_call_operand.vmem [shape: f32[16,1], index: 4, kind: output, shape index: {1}]
  %5 = xla_tuple %s3, %s4
  %s6 = sld [smem:[#allocation0]]
  $region38: #{dec_forward_train.6} parent=0
    _
  %s8 = ssub.s32 1, %s6
  %s9 = scalar_select 0, %s8, %s6
  // Predicated region
  $region2: #{dec_forward_train.6} parent=0 // pred_check
    _
  $region3: #{dec_forward_train.6} parent=0 // pred_check_branch
    %11 = sbr.rel (0) target = $region5
  $region4: #{dec_forward_train.6} parent=0 // pred_region
    _
  $region5: #{dec_forward_train.6} parent=0 // pred_fallthru
    _
  // Predicated region
  $region6: #{dec_forward_train.6} parent=0 // pred_check
    _
  $region7: #{dec_forward_train.6} parent=0 // pred_check_branch
    %13 = sbr.rel (0) target = $region9
  $region8: #{dec_forward_train.6} parent=0 // pred_region
    _
  $region9: #{dec_forward_train.6} parent=0 // pred_fallthru
    _
  // Predicated region
  $region10: #{dec_forward_train.6} parent=0 // pred_check
    _
  $region11: #{dec_forward_train.6} parent=0 // pred_check_branch
    %15 = sbr.rel (0) target = $region13
  $region12: #{dec_forward_train.6} parent=0 // pred_region
    _
  $region13: #{dec_forward_train.6} parent=0 // pred_fallthru
    _
  %p17 = scmp.eq.s32.totalorder 0, 0
  // Predicated region
  $region14: #{dec_forward_train.6} parent=0 // pred_check
    %p18 = pneg %p17
  $region15: #{dec_forward_train.6} parent=0 // pred_check_branch
    %20 = sbr.rel (%p18) target = $region17
  $region16: #{dec_forward_train.6} parent=0 // pred_region
    %vm21 = vcmask 7168
    %22 = vst.msk [vmem:[#allocation2] sm:$0xff] %vm21, -1e+30
    %23 = vst.msk [vmem:[#allocation2 + $0x8] sm:$0xff] %vm21, -1e+30
    %24 = vst.msk [vmem:[#allocation3] sm:$0xff] %vm21, 0.0
    %25 = vst.msk [vmem:[#allocation3 + $0x8] sm:$0xff] %vm21, 0.0
  $region17: #{dec_forward_train.6} parent=0 // pred_fallthru
    _
  %v26 = vld [vmem:[%s0] sm:$0xf]
  %v27 = vld [vmem:[%s0 + $0x4] sm:$0xf]
  %v28 = vld [vmem:[%s1] sm:$0xf]
  %v29 = vld [vmem:[%s1 + $0x4] sm:$0xf]
  %v30 = vld [vmem:[%s1 + $0x8] sm:$0xf]
  %v31 = vld [vmem:[%s1 + $0xc] sm:$0xf]
  %v32 = vld [vmem:[%s2] sm:$0x1]
  %v34 = vlaneseq
  %v35 = vshrl.u32 %v34, 7
  %v36 = vsub.s32 0, %v35
  %v37 = vrot.slane %v32, %v36
  %v41 = vunpack.c.l.b16 %v26
  %v42 = vunpack.c.l.b16 %v27
  %v43 = vpack.c.b16 %v42, %v41
  %v48 = vunpack.c.l.b16 %v28
  %v49 = vunpack.c.l.b16 %v29
  %v50 = vunpack.c.l.b16 %v30
  %v51 = vunpack.c.l.b16 %v31
  %v52 = vpack.c.b16 %v49, %v48
  %v53 = vpack.c.b16 %v51, %v50
  %vm56 = vcmask 261120
  %v58 = vsel %vm56, %v43, 0
  %60 = vmatprep.subr.bf16.mxu0 0
  %61 = vmatpush1.bf16.msra.mxu0 %v52
  %62 = vmatprep.subr.bf16.mxu0 0
  %63 = vmatpush1.bf16.msra.mxu0 %v53
  %64 = vmatprep.subr.bf16.mxu0 0
  %65 = vmatpush1.bf16.msra.mxu0 0
  %66 = vmatprep.subr.bf16.mxu0 0
  %67 = vmatpush1.bf16.msra.mxu0 0
  %68 = vmatprep.subr.bf16.mxu0 0
  %69 = vmatpush1.bf16.msra.mxu0 0
  %70 = vmatprep.subr.bf16.mxu0 0
  %71 = vmatpush1.bf16.msra.mxu0 0
  %72 = vmatprep.subr.bf16.mxu0 0
  %73 = vmatpush1.bf16.msra.mxu0 0
  %74 = vmatprep.subr.bf16.mxu0 0
  %75 = vmatpush1.bf16.msra.mxu0 0
  %76 = vmatprep.subr.bf16.mxu0 0
  %77 = vmatpush1.bf16.msra.mxu0 0
  %78 = vmatprep.subr.bf16.mxu0 0
  %79 = vmatpush1.bf16.msra.mxu0 0
  %80 = vmatprep.subr.bf16.mxu0 0
  %81 = vmatpush1.bf16.msra.mxu0 0
  %82 = vmatprep.subr.bf16.mxu0 0
  %83 = vmatpush1.bf16.msra.mxu0 0
  %84 = vmatprep.subr.bf16.mxu0 0
  %85 = vmatpush1.bf16.msra.mxu0 0
  %86 = vmatprep.subr.bf16.mxu0 0
  %87 = vmatpush1.bf16.msra.mxu0 0
  %88 = vmatprep.subr.bf16.mxu0 0
  %89 = vmatpush1.bf16.msra.mxu0 0
  %90 = vmatprep.subr.bf16.mxu0 0
  %91 = vmatpush1.bf16.msra.mxu0 0
  %92 = vmatprep.mubr.bf16.mxu0 0
  %93 = vmatmul.mubr.bf16.gmra.mrb[0].mxu0 %v58
  %v94 = vpop.f32.mrb[0].mxu0
  %v95 = vadd.f32 %v37, %v94
  %v96 = vpop.f32.mrb[0].mxu0
  %v97 = vpop.f32.mrb[0].mxu0
  %v98 = vadd.f32 %v37, %v97
  %v99 = vpop.f32.mrb[0].mxu0
  %100 = vdwg.mxu0
  %vm101 = vcmask 523264
  %102 = vst.msk [vmem:[%s3] sm:$0xff] %vm101, %v95
  %103 = vst.msk [vmem:[%s3 + $0x8] sm:$0xff] %vm101, %v98
  %v104 = vld [vmem:[#allocation2] sm:$0xff]
  %v105 = vld [vmem:[#allocation2 + $0x8] sm:$0xff]
  %v106 = vsel %vm101, %v95, -inf
  %107 = vmax.xlane.f32.xlu0 %v106
  %v108 = vpop.xlane.xlu0 %107
  %v109 = vsel %vm101, %v98, -inf
  %110 = vmax.xlane.f32.xlu0 %v109
  %v111 = vpop.xlane.xlu0 %110
  %v112 = vmax.f32 %v104, %v108
  %v113 = vmax.f32 %v105, %v111
  %v114 = vld [vmem:[#allocation3] sm:$0xff]
  %v115 = vld [vmem:[#allocation3 + $0x8] sm:$0xff]
  %v116 = vsub.f32 %v104, %v112
  %v117 = vsub.f32 %v105, %v113
  %v118 = vmul.f32 %v116, 1.442695
  %v119 = vpow.pop %v118
  %v120 = vmul.f32 %v117, 1.442695
  %v121 = vpow.pop %v120
  %v122 = vmul.f32 %v114, %v119
  %v123 = vmul.f32 %v115, %v121
  %125 = vset.pattern.permute.xlu0 0
  %126 = vperm.xlu0 %125, %v112
  %v127 = vpop.permute.xlu0 %126
  %130 = vset.pattern.permute.xlu0 0
  %131 = vperm.xlu0 %130, %v113
  %v132 = vpop.permute.xlu0 %131
  %v134 = vsub.f32 %v95, %v127
  %v135 = vsub.f32 %v98, %v132
  %v136 = vmul.f32 %v134, 1.442695
  %v137 = vpow.pop %v136
  %v138 = vmul.f32 %v135, 1.442695
  %v139 = vpow.pop %v138
  %v140 = vsel %vm101, %v137, 0.0
  %141 = vadd.xlane.f32.xlu0 %v140
  %v142 = vpop.xlane.xlu0 %141
  %v143 = vsel %vm101, %v139, 0.0
  %144 = vadd.xlane.f32.xlu0 %v143
  %v145 = vpop.xlane.xlu0 %144
  %v146 = vadd.f32 %v122, %v142
  %v147 = vadd.f32 %v123, %v145
  %vm148 = vcmask 7168
  %149 = vst.msk [vmem:[#allocation3] sm:$0xff] %vm148, %v146
  %150 = vst.msk [vmem:[#allocation3 + $0x8] sm:$0xff] %vm148, %v147
  %151 = vst.msk [vmem:[#allocation2] sm:$0xff] %vm148, %v112
  %152 = vst.msk [vmem:[#allocation2 + $0x8] sm:$0xff] %vm148, %v113
  // Predicated region
  $region18: #{dec_forward_train.6} parent=0 // pred_check
    %p153 = pneg %p17
  $region19: #{dec_forward_train.6} parent=0 // pred_check_branch
    %155 = sbr.rel (%p153) target = $region21
  $region20: #{dec_forward_train.6} parent=0 // pred_region
    %v156 = vld [vmem:[#allocation2] sm:$0xff]
    %v157 = vld [vmem:[#allocation2 + $0x8] sm:$0xff]
    %v158 = vld [vmem:[#allocation3] sm:$0xff]
    %v159 = vld [vmem:[#allocation3 + $0x8] sm:$0xff]
    %v160 = vlog2.pop %v158
    %v161 = vmul.f32 %v160, 0.6931472
    %v162 = vlog2.pop %v159
    %v163 = vmul.f32 %v162, 0.6931472
    %v164 = vadd.f32 %v156, %v161
    %v165 = vadd.f32 %v157, %v163
    %166 = vst.msk [vmem:[%s4] sm:$0xff] %vm148, %v164
    %167 = vst.msk [vmem:[%s4 + $0x8] sm:$0xff] %vm148, %v165
  $region21: #{dec_forward_train.6} parent=0 // pred_fallthru
    _
  // Predicated region
  $region22: #{dec_forward_train.6} parent=0 // pred_check
    _
  $region23: #{dec_forward_train.6} parent=0 // pred_check_branch
    %169 = sbr.rel (0) target = $region25
  $region24: #{dec_forward_train.6} parent=0 // pred_region
    _
  $region25: #{dec_forward_train.6} parent=0 // pred_fallthru
    _
  // Predicated region
  $region26: #{dec_forward_train.6} parent=0 // pred_check
    _
  $region27: #{dec_forward_train.6} parent=0 // pred_check_branch
    %171 = sbr.rel (0) target = $region29
  $region28: #{dec_forward_train.6} parent=0 // pred_region
    _
  $region29: #{dec_forward_train.6} parent=0 // pred_fallthru
    _
  // Predicated region
  $region30: #{dec_forward_train.6} parent=0 // pred_check
    _
  $region31: #{dec_forward_train.6} parent=0 // pred_check_branch
    %173 = sbr.rel (0) target = $region33
  $region32: #{dec_forward_train.6} parent=0 // pred_region
    _
  $region33: #{dec_forward_train.6} parent=0 // pred_fallthru
    _
  // Predicated region
  $region34: #{dec_forward_train.6} parent=0 // pred_check
    _
  $region35: #{dec_forward_train.6} parent=0 // pred_check_branch
    %175 = sbr.rel (0) target = $region37
  $region36: #{dec_forward_train.6} parent=0 // pred_region
    _
  $region37: #{dec_forward_train.6} parent=0 // pred_fallthru
    _

// kernel: dec_forward_train.5
$region0: #{dec_forward_train.5}
  #allocation0 [shape = 'u32[]', space=smem, size = 0x4, offset = 0x4, fixed_abs, tag = 'smem constant byte address 0x4 - core index']
  #allocation1 [shape = 'u32[144,128]{1,0:T(1,128)}', space=vmem, size = 0x12000, scoped, tag = 'internal scratch']
  #allocation2 [shape = 'f32[2,2,32]{2,1,0:T(2,128)}', space=vmem, size = 0x800, scoped, tag = 'scratch operand']
  #allocation3 [shape = 'f32[2,2,32]{2,1,0:T(2,128)}', space=vmem, size = 0x800, scoped, tag = 'scratch operand']
  %s0 = inlined_call_operand.vmem [shape: f32[8,2,128], index: 0, kind: input, shape index: {}]
  %s1 = inlined_call_operand.vmem [shape: f32[2,8,32], index: 1, kind: input, shape index: {}]
  %s2 = inlined_call_operand.vmem [shape: f32[2,2,32], index: 2, kind: input, shape index: {}]
  %s3 = inlined_call_operand.vmem [shape: f32[2,2,32], index: 3, kind: input, shape index: {}]
  %s4 = inlined_call_operand.vmem [shape: bf16[2,32,128], index: 4, kind: input, shape index: {}]
  %s5 = inlined_call_operand.vmem [shape: bf16[1,32,128], index: 5, kind: input, shape index: {}]
  %s6 = inlined_call_operand.vmem [shape: f32[1,1,128], index: 6, kind: input, shape index: {}]
  %s7 = inlined_call_operand.vmem [shape: bf16[32,32], index: 7, kind: input, shape index: {}]
  %s8 = inlined_call_operand.vmem [shape: bf16[32,32], index: 8, kind: input, shape index: {}]
  %s9 = inlined_call_operand.vmem [shape: f32[1,32], index: 9, kind: input, shape index: {}]
  %s10 = inlined_call_operand.vmem [shape: f32[8,2,32], index: 10, kind: output, shape index: {0}]
  %s11 = inlined_call_operand.hbm [shape: f32[8,2,8], index: 11, kind: output, shape index: {1}]
  %s12 = inlined_call_operand.hbm [shape: f32[2,2,32], index: 12, kind: output, shape index: {2}]
  %s13 = inlined_call_operand.hbm [shape: f32[2,2,32], index: 13, kind: output, shape index: {3}]
  %14 = xla_tuple %s10, %s11, %s12, %s13
  %s15 = sld [smem:[#allocation0]]
  $region112: #{dec_forward_train.5} parent=0
    _
  %s17 = ssub.s32 1, %s15
  %s18 = scalar_select 0, %s17, %s15
  $region1: #{dec_forward_train.5} parent=0
    #allocation4 [shape = 'u8[8192]{0}', space=vmem, size = 0x2000, scoped, tag = 'output window, operand 1']
    #allocation5 [shape = 's32[2]{0}', space=sflag, size = 0x8, scoped, tag = 'scoped memory for dec_forward_train.5']
    #allocation6 [shape = 'u8[2048]{0}', space=vmem, size = 0x800, scoped, tag = 'output window, operand 2, single buffered']
    #allocation7 [shape = 's32[1]{0}', space=sflag, size = 0x4, scoped, tag = 'scoped memory for dec_forward_train.5']
    #allocation8 [shape = 'u8[2048]{0}', space=vmem, size = 0x800, scoped, tag = 'output window, operand 3, single buffered']
    %19 = vsyncpa [#allocation5], 0
    %s20 = scalar_lea.sflag [#allocation5], 1
    %21 = vsyncpa %s20, 0
    %22 = vsyncpa [#allocation7], 0
    loop: start=0, step=1, limit=4
    $region2: #{dec_forward_train.5} parent=1 // loop_pre_header
      _
    $region3: #{dec_forward_train.5} parent=1 // loop_header
      %s24 = sphi 0, %s28
      %p25 = scmp.ge.s32.totalorder %s24, 4
      %s31 = sphi 0, %s43
      %s32 = sphi 0, %s39
      %s33 = sphi 0, %s31
      %s34 = sphi 0, %s32
      %s35 = sphi 0, %s33
      %s36 = sphi 0, %s34
      %s48 = sphi 0, %s50
      %s51 = sphi 0, %s48
      %s52 = sphi 0, %s51
      %s68 = sphi 0, %s52
      %s74 = sphi 0, %s76
      %s77 = sphi 0, %s74
      %s78 = sphi 0, %s77
      %s94 = sphi 0, %s78
      %s100 = sphi 0, %s102
      %s103 = sphi 0, %s100
      %s104 = sphi 0, %s103
      %s120 = sphi 0, %s104
      %s126 = sphi 0, %s128
      %s129 = sphi 0, %s126
      %s130 = sphi 0, %s129
      %s146 = sphi 0, %s130
      %s150 = sphi 0, %s150
      %s152 = sphi 0, %s150
      %s153 = sphi 0, %s152
      %s167 = sphi 0, %s153
      %s171 = sphi 0, %s171
      %s173 = sphi 0, %s171
      %s174 = sphi 0, %s173
      %s188 = sphi 0, %s174
      %s192 = sphi 0, %s192
      %s194 = sphi 0, %s192
      %s195 = sphi 0, %s194
      %s209 = sphi 0, %s195
      %s213 = sphi 0, %s213
      %s215 = sphi 0, %s213
      %s216 = sphi 0, %s215
      %s230 = sphi 0, %s216
      %s234 = sphi 0, %s234
      %s236 = sphi 0, %s234
      %s237 = sphi 0, %s236
      %s251 = sphi 0, %s237
      %s255 = sphi 0, %s255
      %s257 = sphi 0, %s255
      %s258 = sphi 0, %s257
      %s272 = sphi 0, %s258
      %s280 = sphi 0, %s282
      %s283 = sphi 0, %s280
      %s284 = sphi 0, %s283
      %s300 = sphi 0, %s284
      %s308 = sphi 0, %s310
      %s311 = sphi 0, %s308
      %s312 = sphi 0, %s311
      %s328 = sphi 0, %s312
      %s334 = sphi 0, %s336
      %s337 = sphi 0, %s334
      %s338 = sphi 0, %s337
      %s354 = sphi 0, %s338
      %s360 = sphi 0, %s362
      %s363 = sphi 0, %s360
      %s364 = sphi 0, %s363
      %s380 = sphi 0, %s364
    $region4: #{dec_forward_train.5} parent=1 // loop_header_branch
      %27 = sbr.rel (%p25) target = $region8
    $region5: #{dec_forward_train.5} parent=1 // loop_body
      %s29 = ssub.s32 %s24, 1
      %s30 = ssub.s32 %s24, 2
      %s37 = sadd.s32 1, %s32
      %p38 = scmp.ge.s32.totalorder %s37, 2
      %s39 = scalar_select %p38, 0, %s37
      %s40 = sadd.s32 1, %s31
      %s41 = scalar_select %p38, %s40, %s31
      %p42 = scmp.ge.s32.totalorder %s41, 1
      %s43 = scalar_select %p42, 0, %s41
      %s44 = ssub.s32 %s32, %s39
      %s45 = ssub.s32 %s31, %s43
      %s46 = sor.u32 %s44, %s45
      %p47 = scmp.eq.s32.totalorder %s46, 0
      %s49 = sadd.s32 %s48, 1
      %s50 = scalar_select %p47, %s48, %s49
      %p53 = pneg %p47
      %p54 = scmp.eq.s32.totalorder %s24, 1
      %p55 = por %p53, %p54
      %p56 = scmp.ne.s32.totalorder %s48, %s51
      %p57 = scmp.eq.s32.totalorder %s24, 0
      %p58 = por %p56, %p57
      %p59 = scmp.ne.s32.totalorder %s48, %s51
      %p60 = scmp.eq.s32.totalorder %s29, 1
      %p61 = por %p59, %p60
      %p62 = scmp.ne.s32.totalorder %s51, %s52
      %p63 = scmp.eq.s32.totalorder %s29, 0
      %p64 = por %p62, %p63
      %p65 = scmp.ne.s32.totalorder %s51, %s52
      %p66 = scmp.eq.s32.totalorder %s30, 1
      %p67 = por %p65, %p66
      %p69 = scmp.ne.s32.totalorder %s52, %s68
      %p70 = scmp.eq.s32.totalorder %s30, 0
      %p71 = por %p69, %p70
      %s72 = ssub.s32 %s31, %s43
      %p73 = scmp.eq.s32.totalorder %s72, 0
      %s75 = sadd.s32 %s74, 1
      %s76 = scalar_select %p73, %s74, %s75
      %p79 = pneg %p73
      %p80 = scmp.eq.s32.totalorder %s24, 1
      %p81 = por %p79, %p80
      %p82 = scmp.ne.s32.totalorder %s74, %s77
      %p83 = scmp.eq.s32.totalorder %s24, 0
      %p84 = por %p82, %p83
      %p85 = scmp.ne.s32.totalorder %s74, %s77
      %p86 = scmp.eq.s32.totalorder %s29, 1
      %p87 = por %p85, %p86
      %p88 = scmp.ne.s32.totalorder %s77, %s78
      %p89 = scmp.eq.s32.totalorder %s29, 0
      %p90 = por %p88, %p89
      %p91 = scmp.ne.s32.totalorder %s77, %s78
      %p92 = scmp.eq.s32.totalorder %s30, 1
      %p93 = por %p91, %p92
      %p95 = scmp.ne.s32.totalorder %s78, %s94
      %p96 = scmp.eq.s32.totalorder %s30, 0
      %p97 = por %p95, %p96
      %s98 = ssub.s32 %s31, %s43
      %p99 = scmp.eq.s32.totalorder %s98, 0
      %s101 = sadd.s32 %s100, 1
      %s102 = scalar_select %p99, %s100, %s101
      %p105 = pneg %p99
      %p106 = scmp.eq.s32.totalorder %s24, 1
      %p107 = por %p105, %p106
      %p108 = scmp.ne.s32.totalorder %s100, %s103
      %p109 = scmp.eq.s32.totalorder %s24, 0
      %p110 = por %p108, %p109
      %p111 = scmp.ne.s32.totalorder %s100, %s103
      %p112 = scmp.eq.s32.totalorder %s29, 1
      %p113 = por %p111, %p112
      %p114 = scmp.ne.s32.totalorder %s103, %s104
      %p115 = scmp.eq.s32.totalorder %s29, 0
      %p116 = por %p114, %p115
      %p117 = scmp.ne.s32.totalorder %s103, %s104
      %p118 = scmp.eq.s32.totalorder %s30, 1
      %p119 = por %p117, %p118
      %p121 = scmp.ne.s32.totalorder %s104, %s120
      %p122 = scmp.eq.s32.totalorder %s30, 0
      %p123 = por %p121, %p122
      %s124 = ssub.s32 %s31, %s43
      %p125 = scmp.eq.s32.totalorder %s124, 0
      %s127 = sadd.s32 %s126, 1
      %s128 = scalar_select %p125, %s126, %s127
      %p131 = pneg %p125
      %p132 = scmp.eq.s32.totalorder %s24, 1
      %p133 = por %p131, %p132
      %p134 = scmp.ne.s32.totalorder %s126, %s129
      %p135 = scmp.eq.s32.totalorder %s24, 0
      %p136 = por %p134, %p135
      %p137 = scmp.ne.s32.totalorder %s126, %s129
      %p138 = scmp.eq.s32.totalorder %s29, 1
      %p139 = por %p137, %p138
      %p140 = scmp.ne.s32.totalorder %s129, %s130
      %p141 = scmp.eq.s32.totalorder %s29, 0
      %p142 = por %p140, %p141
      %p143 = scmp.ne.s32.totalorder %s129, %s130
      %p144 = scmp.eq.s32.totalorder %s30, 1
      %p145 = por %p143, %p144
      %p147 = scmp.ne.s32.totalorder %s130, %s146
      %p148 = scmp.eq.s32.totalorder %s30, 0
      %p149 = por %p147, %p148
      %s151 = sadd.s32 %s150, 1
      %p154 = scmp.eq.s32.totalorder %s24, 1
      %p155 = scmp.ne.s32.totalorder %s150, %s152
      %p156 = scmp.eq.s32.totalorder %s24, 0
      %p157 = por %p155, %p156
      %p158 = scmp.ne.s32.totalorder %s150, %s152
      %p159 = scmp.eq.s32.totalorder %s29, 1
      %p160 = por %p158, %p159
      %p161 = scmp.ne.s32.totalorder %s152, %s153
      %p162 = scmp.eq.s32.totalorder %s29, 0
      %p163 = por %p161, %p162
      %p164 = scmp.ne.s32.totalorder %s152, %s153
      %p165 = scmp.eq.s32.totalorder %s30, 1
      %p166 = por %p164, %p165
      %p168 = scmp.ne.s32.totalorder %s153, %s167
      %p169 = scmp.eq.s32.totalorder %s30, 0
      %p170 = por %p168, %p169
      %s172 = sadd.s32 %s171, 1
      %p175 = scmp.eq.s32.totalorder %s24, 1
      %p176 = scmp.ne.s32.totalorder %s171, %s173
      %p177 = scmp.eq.s32.totalorder %s24, 0
      %p178 = por %p176, %p177
      %p179 = scmp.ne.s32.totalorder %s171, %s173
      %p180 = scmp.eq.s32.totalorder %s29, 1
      %p181 = por %p179, %p180
      %p182 = scmp.ne.s32.totalorder %s173, %s174
      %p183 = scmp.eq.s32.totalorder %s29, 0
      %p184 = por %p182, %p183
      %p185 = scmp.ne.s32.totalorder %s173, %s174
      %p186 = scmp.eq.s32.totalorder %s30, 1
      %p187 = por %p185, %p186
      %p189 = scmp.ne.s32.totalorder %s174, %s188
      %p190 = scmp.eq.s32.totalorder %s30, 0
      %p191 = por %p189, %p190
      %s193 = sadd.s32 %s192, 1
      %p196 = scmp.eq.s32.totalorder %s24, 1
      %p197 = scmp.ne.s32.totalorder %s192, %s194
      %p198 = scmp.eq.s32.totalorder %s24, 0
      %p199 = por %p197, %p198
      %p200 = scmp.ne.s32.totalorder %s192, %s194
      %p201 = scmp.eq.s32.totalorder %s29, 1
      %p202 = por %p200, %p201
      %p203 = scmp.ne.s32.totalorder %s194, %s195
      %p204 = scmp.eq.s32.totalorder %s29, 0
      %p205 = por %p203, %p204
      %p206 = scmp.ne.s32.totalorder %s194, %s195
      %p207 = scmp.eq.s32.totalorder %s30, 1
      %p208 = por %p206, %p207
      %p210 = scmp.ne.s32.totalorder %s195, %s209
      %p211 = scmp.eq.s32.totalorder %s30, 0
      %p212 = por %p210, %p211
      %s214 = sadd.s32 %s213, 1
      %p217 = scmp.eq.s32.totalorder %s24, 1
      %p218 = scmp.ne.s32.totalorder %s213, %s215
      %p219 = scmp.eq.s32.totalorder %s24, 0
      %p220 = por %p218, %p219
      %p221 = scmp.ne.s32.totalorder %s213, %s215
      %p222 = scmp.eq.s32.totalorder %s29, 1
      %p223 = por %p221, %p222
      %p224 = scmp.ne.s32.totalorder %s215, %s216
      %p225 = scmp.eq.s32.totalorder %s29, 0
      %p226 = por %p224, %p225
      %p227 = scmp.ne.s32.totalorder %s215, %s216
      %p228 = scmp.eq.s32.totalorder %s30, 1
      %p229 = por %p227, %p228
      %p231 = scmp.ne.s32.totalorder %s216, %s230
      %p232 = scmp.eq.s32.totalorder %s30, 0
      %p233 = por %p231, %p232
      %s235 = sadd.s32 %s234, 1
      %p238 = scmp.eq.s32.totalorder %s24, 1
      %p239 = scmp.ne.s32.totalorder %s234, %s236
      %p240 = scmp.eq.s32.totalorder %s24, 0
      %p241 = por %p239, %p240
      %p242 = scmp.ne.s32.totalorder %s234, %s236
      %p243 = scmp.eq.s32.totalorder %s29, 1
      %p244 = por %p242, %p243
      %p245 = scmp.ne.s32.totalorder %s236, %s237
      %p246 = scmp.eq.s32.totalorder %s29, 0
      %p247 = por %p245, %p246
      %p248 = scmp.ne.s32.totalorder %s236, %s237
      %p249 = scmp.eq.s32.totalorder %s30, 1
      %p250 = por %p248, %p249
      %p252 = scmp.ne.s32.totalorder %s237, %s251
      %p253 = scmp.eq.s32.totalorder %s30, 0
      %p254 = por %p252, %p253
      %s256 = sadd.s32 %s255, 1
      %p259 = scmp.eq.s32.totalorder %s24, 1
      %p260 = scmp.ne.s32.totalorder %s255, %s257
      %p261 = scmp.eq.s32.totalorder %s24, 0
      %p262 = por %p260, %p261
      %p263 = scmp.ne.s32.totalorder %s255, %s257
      %p264 = scmp.eq.s32.totalorder %s29, 1
      %p265 = por %p263, %p264
      %p266 = scmp.ne.s32.totalorder %s257, %s258
      %p267 = scmp.eq.s32.totalorder %s29, 0
      %p268 = por %p266, %p267
      %p269 = scmp.ne.s32.totalorder %s257, %s258
      %p270 = scmp.eq.s32.totalorder %s30, 1
      %p271 = por %p269, %p270
      %p273 = scmp.ne.s32.totalorder %s258, %s272
      %p274 = scmp.eq.s32.totalorder %s30, 0
      %p275 = por %p273, %p274
      %s276 = ssub.s32 %s32, %s39
      %s277 = ssub.s32 %s31, %s43
      %s278 = sor.u32 %s276, %s277
      %p279 = scmp.eq.s32.totalorder %s278, 0
      %s281 = sadd.s32 %s280, 1
      %s282 = scalar_select %p279, %s280, %s281
      %p285 = pneg %p279
      %p286 = scmp.eq.s32.totalorder %s24, 1
      %p287 = por %p285, %p286
      %p288 = scmp.ne.s32.totalorder %s280, %s283
      %p289 = scmp.eq.s32.totalorder %s24, 0
      %p290 = por %p288, %p289
      %p291 = scmp.ne.s32.totalorder %s280, %s283
      %p292 = scmp.eq.s32.totalorder %s29, 1
      %p293 = por %p291, %p292
      %p294 = scmp.ne.s32.totalorder %s283, %s284
      %p295 = scmp.eq.s32.totalorder %s29, 0
      %p296 = por %p294, %p295
      %p297 = scmp.ne.s32.totalorder %s283, %s284
      %p298 = scmp.eq.s32.totalorder %s30, 1
      %p299 = por %p297, %p298
      %p301 = scmp.ne.s32.totalorder %s284, %s300
      %p302 = scmp.eq.s32.totalorder %s30, 0
      %p303 = por %p301, %p302
      %s304 = ssub.s32 %s32, %s39
      %s305 = ssub.s32 %s31, %s43
      %s306 = sor.u32 %s304, %s305
      %p307 = scmp.eq.s32.totalorder %s306, 0
      %s309 = sadd.s32 %s308, 1
      %s310 = scalar_select %p307, %s308, %s309
      %p313 = pneg %p307
      %p314 = scmp.eq.s32.totalorder %s24, 1
      %p315 = por %p313, %p314
      %p316 = scmp.ne.s32.totalorder %s308, %s311
      %p317 = scmp.eq.s32.totalorder %s24, 0
      %p318 = por %p316, %p317
      %p319 = scmp.ne.s32.totalorder %s308, %s311
      %p320 = scmp.eq.s32.totalorder %s29, 1
      %p321 = por %p319, %p320
      %p322 = scmp.ne.s32.totalorder %s311, %s312
      %p323 = scmp.eq.s32.totalorder %s29, 0
      %p324 = por %p322, %p323
      %p325 = scmp.ne.s32.totalorder %s311, %s312
      %p326 = scmp.eq.s32.totalorder %s30, 1
      %p327 = por %p325, %p326
      %p329 = scmp.ne.s32.totalorder %s312, %s328
      %p330 = scmp.eq.s32.totalorder %s30, 0
      %p331 = por %p329, %p330
      %s332 = ssub.s32 %s31, %s43
      %p333 = scmp.eq.s32.totalorder %s332, 0
      %s335 = sadd.s32 %s334, 1
      %s336 = scalar_select %p333, %s334, %s335
      %p339 = pneg %p333
      %p340 = scmp.eq.s32.totalorder %s24, 1
      %p341 = por %p339, %p340
      %p342 = scmp.ne.s32.totalorder %s334, %s337
      %p343 = scmp.eq.s32.totalorder %s24, 0
      %p344 = por %p342, %p343
      %p345 = scmp.ne.s32.totalorder %s334, %s337
      %p346 = scmp.eq.s32.totalorder %s29, 1
      %p347 = por %p345, %p346
      %p348 = scmp.ne.s32.totalorder %s337, %s338
      %p349 = scmp.eq.s32.totalorder %s29, 0
      %p350 = por %p348, %p349
      %p351 = scmp.ne.s32.totalorder %s337, %s338
      %p352 = scmp.eq.s32.totalorder %s30, 1
      %p353 = por %p351, %p352
      %p355 = scmp.ne.s32.totalorder %s338, %s354
      %p356 = scmp.eq.s32.totalorder %s30, 0
      %p357 = por %p355, %p356
      %s358 = ssub.s32 %s31, %s43
      %p359 = scmp.eq.s32.totalorder %s358, 0
      %s361 = sadd.s32 %s360, 1
      %s362 = scalar_select %p359, %s360, %s361
      %p365 = pneg %p359
      %p366 = scmp.eq.s32.totalorder %s24, 1
      %p367 = por %p365, %p366
      %p368 = scmp.ne.s32.totalorder %s360, %s363
      %p369 = scmp.eq.s32.totalorder %s24, 0
      %p370 = por %p368, %p369
      %p371 = scmp.ne.s32.totalorder %s360, %s363
      %p372 = scmp.eq.s32.totalorder %s29, 1
      %p373 = por %p371, %p372
      %p374 = scmp.ne.s32.totalorder %s363, %s364
      %p375 = scmp.eq.s32.totalorder %s29, 0
      %p376 = por %p374, %p375
      %p377 = scmp.ne.s32.totalorder %s363, %s364
      %p378 = scmp.eq.s32.totalorder %s30, 1
      %p379 = por %p377, %p378
      %p381 = scmp.ne.s32.totalorder %s364, %s380
      %p382 = scmp.eq.s32.totalorder %s30, 0
      %p383 = por %p381, %p382
      %p384 = scmp.le.s32.totalorder 1, %s24
      %p385 = scmp.lt.s32.totalorder %s24, 3
      %p386 = pnand %p384, %p385
      %p387 = pneg %p386
      // Predicated region
      $region9: #{dec_forward_train.5} parent=5 // pred_check
        _
      $region10: #{dec_forward_train.5} parent=5 // pred_check_branch
        %389 = sbr.rel (%p386) target = $region12
      $region11: #{dec_forward_train.5} parent=5 // pred_region
        %s390 = ssub.s32 %s24, 1
        // Predicated region
        $region13: #{dec_forward_train.5} parent=11 // pred_check
          %p391 = pneg %p90
        $region14: #{dec_forward_train.5} parent=11 // pred_check_branch
          %393 = sbr.rel (%p391) target = $region16
        $region15: #{dec_forward_train.5} parent=11 // pred_region
          %s394 = smul.u32 2, %s33
          %p395 = scmp.lt.s32.totalorder %s394, 1
          %s396 = scalar_select %p395, %s394, 1
          %s397 = smul.addr %s396, 8
          %s398 = scalar_lea.vmem %s1, %s397
          %s399 = smul.u32 2, %s33
        $region16: #{dec_forward_train.5} parent=11 // pred_fallthru
          _
        // Predicated region
        $region17: #{dec_forward_train.5} parent=11 // pred_check
          %p400 = pneg %p116
        $region18: #{dec_forward_train.5} parent=11 // pred_check_branch
          %402 = sbr.rel (%p400) target = $region20
        $region19: #{dec_forward_train.5} parent=11 // pred_region
          %p403 = scmp.lt.s32.totalorder %s33, 0
          %s404 = scalar_select %p403, %s33, 0
          %s405 = smul.addr %s404, 2
          %s406 = scalar_lea.vmem %s2, %s405
        $region20: #{dec_forward_train.5} parent=11 // pred_fallthru
          _
        // Predicated region
        $region21: #{dec_forward_train.5} parent=11 // pred_check
          %p407 = pneg %p142
        $region22: #{dec_forward_train.5} parent=11 // pred_check_branch
          %409 = sbr.rel (%p407) target = $region24
        $region23: #{dec_forward_train.5} parent=11 // pred_region
          %p410 = scmp.lt.s32.totalorder %s33, 0
          %s411 = scalar_select %p410, %s33, 0
          %s412 = smul.addr %s411, 2
          %s413 = scalar_lea.vmem %s3, %s412
        $region24: #{dec_forward_train.5} parent=11 // pred_fallthru
          _
        // Predicated region
        $region25: #{dec_forward_train.5} parent=11 // pred_check
          %p414 = pneg %p163
        $region26: #{dec_forward_train.5} parent=11 // pred_check_branch
          %416 = sbr.rel (%p414) target = $region28
        $region27: #{dec_forward_train.5} parent=11 // pred_region
          _
        $region28: #{dec_forward_train.5} parent=11 // pred_fallthru
          _
        // Predicated region
        $region29: #{dec_forward_train.5} parent=11 // pred_check
          %p417 = pneg %p184
        $region30: #{dec_forward_train.5} parent=11 // pred_check_branch
          %419 = sbr.rel (%p417) target = $region32
        $region31: #{dec_forward_train.5} parent=11 // pred_region
          _
        $region32: #{dec_forward_train.5} parent=11 // pred_fallthru
          _
        // Predicated region
        $region33: #{dec_forward_train.5} parent=11 // pred_check
          %p420 = pneg %p205
        $region34: #{dec_forward_train.5} parent=11 // pred_check_branch
          %422 = sbr.rel (%p420) target = $region36
        $region35: #{dec_forward_train.5} parent=11 // pred_region
          _
        $region36: #{dec_forward_train.5} parent=11 // pred_fallthru
          _
        // Predicated region
        $region37: #{dec_forward_train.5} parent=11 // pred_check
          %p423 = pneg %p226
        $region38: #{dec_forward_train.5} parent=11 // pred_check_branch
          %425 = sbr.rel (%p423) target = $region40
        $region39: #{dec_forward_train.5} parent=11 // pred_region
          _
        $region40: #{dec_forward_train.5} parent=11 // pred_fallthru
          _
        // Predicated region
        $region41: #{dec_forward_train.5} parent=11 // pred_check
          %p426 = pneg %p247
        $region42: #{dec_forward_train.5} parent=11 // pred_check_branch
          %428 = sbr.rel (%p426) target = $region44
        $region43: #{dec_forward_train.5} parent=11 // pred_region
          _
        $region44: #{dec_forward_train.5} parent=11 // pred_fallthru
          _
        // Predicated region
        $region45: #{dec_forward_train.5} parent=11 // pred_check
          %p429 = pneg %p268
        $region46: #{dec_forward_train.5} parent=11 // pred_check_branch
          %431 = sbr.rel (%p429) target = $region48
        $region47: #{dec_forward_train.5} parent=11 // pred_region
          _
        $region48: #{dec_forward_train.5} parent=11 // pred_fallthru
          _
      $region12: #{dec_forward_train.5} parent=5 // pred_fallthru
        _
      %p432 = scmp.lt.s32.totalorder %s24, 2
      // Predicated region
      $region49: #{dec_forward_train.5} parent=5 // pred_check
        %p433 = pneg %p432
      $region50: #{dec_forward_train.5} parent=5 // pred_check_branch
        %435 = sbr.rel (%p433) target = $region52
      $region51: #{dec_forward_train.5} parent=5 // pred_region
        // Predicated region
        $region53: #{dec_forward_train.5} parent=51 // pred_check
          %p436 = pneg %p58
        $region54: #{dec_forward_train.5} parent=51 // pred_check_branch
          %438 = sbr.rel (%p436) target = $region56
        $region55: #{dec_forward_train.5} parent=51 // pred_region
          %s439 = smul.u32 4, %s32
          %p440 = scmp.lt.s32.totalorder %s439, 7
          %s441 = scalar_select %p440, %s439, 7
          %p442 = scmp.lt.s32.totalorder %s31, 0
          %s443 = scalar_select %p442, %s31, 0
          %s444 = sadd.s32 %s443, %s441
          %s445 = smul.addr %s444, 2
          %s446 = scalar_lea.vmem %s0, %s445
          %s447 = smul.u32 4, %s32
        $region56: #{dec_forward_train.5} parent=51 // pred_fallthru
          _
      $region52: #{dec_forward_train.5} parent=5 // pred_fallthru
        _
      %p448 = scmp.le.s32.totalorder 1, %s24
      %p449 = scmp.lt.s32.totalorder %s24, 3
      %p450 = pnand %p448, %p449
      %p451 = pneg %p450
      // Predicated region
      $region57: #{dec_forward_train.5} parent=5 // pred_check
        _
      $region58: #{dec_forward_train.5} parent=5 // pred_check_branch
        %453 = sbr.rel (%p450) target = $region60
      $region59: #{dec_forward_train.5} parent=5 // pred_region
        %s454 = ssub.s32 %s24, 1
        %s455 = smul.u32 4, %s34
        %p456 = scmp.lt.s32.totalorder %s455, 7
        %s457 = scalar_select %p456, %s455, 7
        %p458 = scmp.lt.s32.totalorder %s33, 0
        %s459 = scalar_select %p458, %s33, 0
        %s460 = sadd.s32 %s459, %s457
        %s461 = smul.addr %s460, 2
        %s462 = scalar_lea.vmem %s0, %s461
        %p463 = pneg %p64
        %p464 = pneg %p61
        %s465 = smul.u32 2, %s33
        %p466 = scmp.lt.s32.totalorder %s465, 1
        %s467 = scalar_select %p466, %s465, 1
        %s468 = smul.addr %s467, 8
        %s469 = scalar_lea.vmem %s1, %s468
        %p470 = pneg %p90
        %p471 = pneg %p87
        %p472 = scmp.lt.s32.totalorder %s33, 0
        %s473 = scalar_select %p472, %s33, 0
        %s474 = smul.addr %s473, 2
        %s475 = scalar_lea.vmem %s2, %s474
        %p476 = pneg %p116
        %p477 = pneg %p113
        %p478 = scmp.lt.s32.totalorder %s33, 0
        %s479 = scalar_select %p478, %s33, 0
        %s480 = smul.addr %s479, 2
        %s481 = scalar_lea.vmem %s3, %s480
        %p482 = pneg %p142
        %p483 = pneg %p139
        %p484 = pneg %p163
        %p485 = pneg %p160
        %p486 = pneg %p184
        %p487 = pneg %p181
        %p488 = pneg %p205
        %p489 = pneg %p202
        %p490 = pneg %p226
        %p491 = pneg %p223
        %p492 = pneg %p247
        %p493 = pneg %p244
        %p494 = pneg %p268
        %p495 = pneg %p265
        %p496 = pneg %p296
        %p497 = pneg %p293
        %s498 = smul.u32 4, %s34
        %p499 = scmp.lt.s32.totalorder %s498, 7
        %s500 = scalar_select %p499, %s498, 7
        %p501 = scmp.lt.s32.totalorder %s33, 0
        %s502 = scalar_select %p501, %s33, 0
        %s503 = sadd.s32 %s502, %s500
        %s504 = smul.addr %s503, 2
        %s505 = scalar_lea.vmem %s10, %s504
        %p506 = pneg %p324
        %p507 = pneg %p321
        %s508 = sand.u32 %s311, 1
        %s509 = scalar_lea.sflag [#allocation5], %s508
        %s510 = sand.u32 %s311, 1
        %s511 = smul.addr %s510, 8
        %s512 = scalar_lea.vmem [#allocation4], %s511
        %p513 = pneg %p350
        %p514 = pneg %p347
        %p515 = pneg %p376
        %p516 = pneg %p373
        %s517 = smul.u32 4, %s34
        %p518 = scmp.lt.s32.totalorder %s517, 7
        %s519 = scalar_select %p518, %s517, 7
        %p520 = scmp.lt.s32.totalorder %s33, 0
        %s521 = scalar_select %p520, %s33, 0
        %s522 = sadd.s32 %s521, %s519
        %s523 = smul.addr %s522, 2
        %s524 = scalar_lea.vmem %s0, %s523
        %s525 = smul.u32 4, %s34
        %s526 = smul.u32 2, %s33
        %p527 = scmp.lt.s32.totalorder %s526, 1
        %s528 = scalar_select %p527, %s526, 1
        %s529 = smul.addr %s528, 8
        %s530 = scalar_lea.vmem %s1, %s529
        %s531 = smul.u32 2, %s33
        %p532 = scmp.lt.s32.totalorder %s33, 0
        %s533 = scalar_select %p532, %s33, 0
        %s534 = smul.addr %s533, 2
        %s535 = scalar_lea.vmem %s2, %s534
        %p536 = scmp.lt.s32.totalorder %s33, 0
        %s537 = scalar_select %p536, %s33, 0
        %s538 = smul.addr %s537, 2
        %s539 = scalar_lea.vmem %s3, %s538
        %s540 = smul.u32 4, %s34
        %p541 = scmp.lt.s32.totalorder %s540, 7
        %s542 = scalar_select %p541, %s540, 7
        %p543 = scmp.lt.s32.totalorder %s33, 0
        %s544 = scalar_select %p543, %s33, 0
        %s545 = sadd.s32 %s544, %s542
        %s546 = smul.addr %s545, 2
        %s547 = scalar_lea.vmem %s10, %s546
        %s548 = smul.u32 4, %s34
        %s549 = smul.u32 4, %s34
        %p551 = scmp.eq.s32.totalorder %s34, 0
        // Predicated region
        $region61: #{dec_forward_train.5} parent=59 // pred_check
          %p552 = pneg %p551
        $region62: #{dec_forward_train.5} parent=59 // pred_check_branch
          %554 = sbr.rel (%p552) target = $region64
        $region63: #{dec_forward_train.5} parent=59 // pred_region
          %v555 = vld [vmem:[%s535] sm:$0x3]
          %v556 = vld [vmem:[%s535 + $0x2] sm:$0x3]
          %vm557 = vcmask 254976
          %558 = vst.msk [vmem:[#allocation2] sm:$0x3] %vm557, %v555
          %559 = vst.msk [vmem:[#allocation2 + $0x2] sm:$0x3] %vm557, %v556
          %v560 = vld [vmem:[%s539] sm:$0x3]
          %v561 = vld [vmem:[%s539 + $0x2] sm:$0x3]
          %562 = vst.msk [vmem:[#allocation3] sm:$0x3] %vm557, %v560
          %563 = vst.msk [vmem:[#allocation3 + $0x2] sm:$0x3] %vm557, %v561
        $region64: #{dec_forward_train.5} parent=59 // pred_fallthru
          _
        %v564 = vld [vmem:[%s530] sm:$0xff]
        %v565 = vld [vmem:[%s530 + $0x8] sm:$0xff]
        %v566 = vld [vmem:[%s4] sm:$0xf]
        %v567 = vld [vmem:[%s4 + $0x4] sm:$0xf]
        %v568 = vld [vmem:[%s4 + $0x8] sm:$0xf]
        %v569 = vld [vmem:[%s4 + $0xc] sm:$0xf]
        %s570 = scalar_lea.vmem %s4, 16
        %v571 = vld [vmem:[%s570] sm:$0xf]
        %v572 = vld [vmem:[%s570 + $0x4] sm:$0xf]
        %v573 = vld [vmem:[%s570 + $0x8] sm:$0xf]
        %v574 = vld [vmem:[%s570 + $0xc] sm:$0xf]
        %v575 = vld [vmem:[%s5] sm:$0xf]
        %v576 = vld [vmem:[%s5 + $0x4] sm:$0xf]
        %v577 = vld [vmem:[%s5 + $0x8] sm:$0xf]
        %v578 = vld [vmem:[%s5 + $0xc] sm:$0xf]
        %v579 = vld [vmem:[%s6] sm:$0x1]
        %v580 = vld [vmem:[%s7] sm:$0xf]
        %v581 = vld [vmem:[%s7 + $0x4] sm:$0xf]
        %v582 = vld [vmem:[%s7 + $0x8] sm:$0xf]
        %v583 = vld [vmem:[%s7 + $0xc] sm:$0xf]
        %v584 = vld [vmem:[%s8] sm:$0xf]
        %v585 = vld [vmem:[%s8 + $0x4] sm:$0xf]
        %v586 = vld [vmem:[%s8 + $0x8] sm:$0xf]
        %v587 = vld [vmem:[%s8 + $0xc] sm:$0xf]
        %v588 = vld [vmem:[%s9] sm:$0x1]
        %v589 = vld [vmem:[#allocation2] sm:$0x3]
        %s590 = scalar_lea.vmem [#allocation2], 2
        %v591 = vld [vmem:[%s590] sm:$0x3]
        %v592 = vld [vmem:[#allocation3] sm:$0x3]
        %s593 = scalar_lea.vmem [#allocation3], 2
        %v594 = vld [vmem:[%s593] sm:$0x3]
        loop: start=0, step=1, limit=2
        $region65: #{dec_forward_train.5} parent=59 // loop_pre_header
          _
        $region66: #{dec_forward_train.5} parent=59 // loop_header
          %s596 = sphi 0, %s600
          %p597 = scmp.ge.s32.totalorder %s596, 2
          %v601 = vphi %v589, %v1585
          %v602 = vphi %v591, %v1588
          %v603 = vphi %v592, %v1592
          %v604 = vphi %v594, %v1596
        $region67: #{dec_forward_train.5} parent=59 // loop_header_branch
          %599 = sbr.rel (%p597) target = $region71
        $region68: #{dec_forward_train.5} parent=59 // loop_body
          %s605 = smul.u32 %s596, 2
          %s606 = sadd.s32 %s605, 1
          %v607 = vpack.c.bf16 %v601, %v601
          %v612 = vunpack.c.l.b16 %v566
          %v613 = vunpack.c.l.b16 %v567
          %v614 = vunpack.c.l.b16 %v568
          %v615 = vunpack.c.l.b16 %v569
          %v616 = vpack.c.b16 %v613, %v612
          %v617 = vpack.c.b16 %v615, %v614
          %vm620 = vcmask 261120
          %v622 = vsel %vm620, %v607, 0
          %624 = vmatprep.subr.bf16.mxu0 0
          %625 = vmatpush1.bf16.msra.mxu0 %v616
          %626 = vmatprep.subr.bf16.mxu0 0
          %627 = vmatpush1.bf16.msra.mxu0 %v617
          %628 = vmatprep.subr.bf16.mxu0 0
          %629 = vmatpush1.bf16.msra.mxu0 0
          %630 = vmatprep.subr.bf16.mxu0 0
          %631 = vmatpush1.bf16.msra.mxu0 0
          %632 = vmatprep.subr.bf16.mxu0 0
          %633 = vmatpush1.bf16.msra.mxu0 0
          %634 = vmatprep.subr.bf16.mxu0 0
          %635 = vmatpush1.bf16.msra.mxu0 0
          %636 = vmatprep.subr.bf16.mxu0 0
          %637 = vmatpush1.bf16.msra.mxu0 0
          %638 = vmatprep.subr.bf16.mxu0 0
          %639 = vmatpush1.bf16.msra.mxu0 0
          %640 = vmatprep.subr.bf16.mxu0 0
          %641 = vmatpush1.bf16.msra.mxu0 0
          %642 = vmatprep.subr.bf16.mxu0 0
          %643 = vmatpush1.bf16.msra.mxu0 0
          %644 = vmatprep.subr.bf16.mxu0 0
          %645 = vmatpush1.bf16.msra.mxu0 0
          %646 = vmatprep.subr.bf16.mxu0 0
          %647 = vmatpush1.bf16.msra.mxu0 0
          %648 = vmatprep.subr.bf16.mxu0 0
          %649 = vmatpush1.bf16.msra.mxu0 0
          %650 = vmatprep.subr.bf16.mxu0 0
          %651 = vmatpush1.bf16.msra.mxu0 0
          %652 = vmatprep.subr.bf16.mxu0 0
          %653 = vmatpush1.bf16.msra.mxu0 0
          %654 = vmatprep.subr.bf16.mxu0 0
          %655 = vmatpush1.bf16.msra.mxu0 0
          %656 = vmatprep.mubr.bf16.mxu0 0
          %657 = vmatmul.mubr.bf16.gmra.mrb[0].mxu0 %v622
          %v658 = vpop.f32.mrb[0].mxu0
          %v659 = vadd.f32 0.0, %v658
          %v660 = vpop.f32.mrb[0].mxu0
          %v661 = vpop.f32.mrb[0].mxu0
          %v662 = vpop.f32.mrb[0].mxu0
          %663 = vdwg.mxu0
          %s664 = smul.u32 %s605, 2
          %s665 = scalar_lea.vmem %s524, %s664
          %v666 = vld [vmem:[%s665] sm:$0x3]
          %v667 = vadd.f32 %v666, %v659
          %v668 = vxor.u32 %v667, 2147483648
          %v669 = vmul.f32 %v668, 1.442695
          %v670 = vpow.pop %v669
          %v671 = vadd.f32 %v670, 1.0
          %v672 = vrcp.pop %v671
          %v673 = vmul.f32 1.0, %v672
          %v674 = vtanh.pop %v667
          %676 = vrot.lane.b32.xlu0 %v603, 32
          %v677 = vpop.permute.xlu0 %676
          %v679 = vmul.f32 %v673, %v677
          %681 = vrot.lane.b32.xlu0 %v674, 64
          %v682 = vpop.permute.xlu0 %681
          %v684 = vmul.f32 %v673, %v682
          %686 = vrot.lane.b32.xlu0 %v684, 32
          %v687 = vpop.permute.xlu0 %686
          %v689 = vadd.f32 %v679, %v687
          %v690 = vtanh.pop %v689
          %692 = vrot.lane.b32.xlu0 %v690, 64
          %v693 = vpop.permute.xlu0 %692
          %v695 = vmul.f32 %v673, %v693
          %v696 = vpack.c.bf16 %v602, %v602
          %v701 = vunpack.c.l.b16 %v571
          %v702 = vunpack.c.l.b16 %v572
          %v703 = vunpack.c.l.b16 %v573
          %v704 = vunpack.c.l.b16 %v574
          %v705 = vpack.c.b16 %v702, %v701
          %v706 = vpack.c.b16 %v704, %v703
          %v710 = vsel %vm620, %v696, 0
          %712 = vmatprep.subr.bf16.mxu0 0
          %713 = vmatpush1.bf16.msra.mxu0 %v705
          %714 = vmatprep.subr.bf16.mxu0 0
          %715 = vmatpush1.bf16.msra.mxu0 %v706
          %716 = vmatprep.subr.bf16.mxu0 0
          %717 = vmatpush1.bf16.msra.mxu0 0
          %718 = vmatprep.subr.bf16.mxu0 0
          %719 = vmatpush1.bf16.msra.mxu0 0
          %720 = vmatprep.subr.bf16.mxu0 0
          %721 = vmatpush1.bf16.msra.mxu0 0
          %722 = vmatprep.subr.bf16.mxu0 0
          %723 = vmatpush1.bf16.msra.mxu0 0
          %724 = vmatprep.subr.bf16.mxu0 0
          %725 = vmatpush1.bf16.msra.mxu0 0
          %726 = vmatprep.subr.bf16.mxu0 0
          %727 = vmatpush1.bf16.msra.mxu0 0
          %728 = vmatprep.subr.bf16.mxu0 0
          %729 = vmatpush1.bf16.msra.mxu0 0
          %730 = vmatprep.subr.bf16.mxu0 0
          %731 = vmatpush1.bf16.msra.mxu0 0
          %732 = vmatprep.subr.bf16.mxu0 0
          %733 = vmatpush1.bf16.msra.mxu0 0
          %734 = vmatprep.subr.bf16.mxu0 0
          %735 = vmatpush1.bf16.msra.mxu0 0
          %736 = vmatprep.subr.bf16.mxu0 0
          %737 = vmatpush1.bf16.msra.mxu0 0
          %738 = vmatprep.subr.bf16.mxu0 0
          %739 = vmatpush1.bf16.msra.mxu0 0
          %740 = vmatprep.subr.bf16.mxu0 0
          %741 = vmatpush1.bf16.msra.mxu0 0
          %742 = vmatprep.subr.bf16.mxu0 0
          %743 = vmatpush1.bf16.msra.mxu0 0
          %744 = vmatprep.mubr.bf16.mxu0 0
          %745 = vmatmul.mubr.bf16.gmra.mrb[0].mxu0 %v710
          %v746 = vpop.f32.mrb[0].mxu0
          %v747 = vadd.f32 0.0, %v746
          %v748 = vpop.f32.mrb[0].mxu0
          %v749 = vpop.f32.mrb[0].mxu0
          %v750 = vpop.f32.mrb[0].mxu0
          %751 = vdwg.mxu0
          %v752 = vpack.c.bf16 %v695, %v695
          %754 = vrot.lane.b32.xlu0 %v752, 32
          %v755 = vpop.permute.xlu0 %754
          %v760 = vunpack.c.l.b16 %v575
          %v761 = vunpack.c.l.b16 %v576
          %v762 = vunpack.c.l.b16 %v577
          %v763 = vunpack.c.l.b16 %v578
          %v764 = vpack.c.b16 %v761, %v760
          %v765 = vpack.c.b16 %v763, %v762
          %v769 = vsel %vm620, %v755, 0
          %771 = vmatprep.subr.bf16.mxu0 0
          %772 = vmatpush1.bf16.msra.mxu0 %v764
          %773 = vmatprep.subr.bf16.mxu0 0
          %774 = vmatpush1.bf16.msra.mxu0 %v765
          %775 = vmatprep.subr.bf16.mxu0 0
          %776 = vmatpush1.bf16.msra.mxu0 0
          %777 = vmatprep.subr.bf16.mxu0 0
          %778 = vmatpush1.bf16.msra.mxu0 0
          %779 = vmatprep.subr.bf16.mxu0 0
          %780 = vmatpush1.bf16.msra.mxu0 0
          %781 = vmatprep.subr.bf16.mxu0 0
          %782 = vmatpush1.bf16.msra.mxu0 0
          %783 = vmatprep.subr.bf16.mxu0 0
          %784 = vmatpush1.bf16.msra.mxu0 0
          %785 = vmatprep.subr.bf16.mxu0 0
          %786 = vmatpush1.bf16.msra.mxu0 0
          %787 = vmatprep.subr.bf16.mxu0 0
          %788 = vmatpush1.bf16.msra.mxu0 0
          %789 = vmatprep.subr.bf16.mxu0 0
          %790 = vmatpush1.bf16.msra.mxu0 0
          %791 = vmatprep.subr.bf16.mxu0 0
          %792 = vmatpush1.bf16.msra.mxu0 0
          %793 = vmatprep.subr.bf16.mxu0 0
          %794 = vmatpush1.bf16.msra.mxu0 0
          %795 = vmatprep.subr.bf16.mxu0 0
          %796 = vmatpush1.bf16.msra.mxu0 0
          %797 = vmatprep.subr.bf16.mxu0 0
          %798 = vmatpush1.bf16.msra.mxu0 0
          %799 = vmatprep.subr.bf16.mxu0 0
          %800 = vmatpush1.bf16.msra.mxu0 0
          %801 = vmatprep.subr.bf16.mxu0 0
          %802 = vmatpush1.bf16.msra.mxu0 0
          %803 = vmatprep.mubr.bf16.mxu0 0
          %804 = vmatmul.mubr.bf16.gmra.mrb[0].mxu0 %v769
          %v805 = vpop.f32.mrb[0].mxu0
          %v806 = vadd.f32 %v747, %v805
          %v807 = vpop.f32.mrb[0].mxu0
          %v808 = vpop.f32.mrb[0].mxu0
          %v809 = vpop.f32.mrb[0].mxu0
          %810 = vdwg.mxu0
          %v812 = vlaneseq
          %v813 = vshrl.u32 %v812, 7
          %v814 = vsub.s32 0, %v813
          %v815 = vrot.slane %v579, %v814
          %v817 = vadd.f32 %v806, %v815
          %v818 = vxor.u32 %v817, 2147483648
          %v819 = vmul.f32 %v818, 1.442695
          %v820 = vpow.pop %v819
          %v821 = vadd.f32 %v820, 1.0
          %v822 = vrcp.pop %v821
          %v823 = vmul.f32 1.0, %v822
          %v824 = vtanh.pop %v817
          %826 = vrot.lane.b32.xlu0 %v604, 32
          %v827 = vpop.permute.xlu0 %826
          %v829 = vmul.f32 %v823, %v827
          %831 = vrot.lane.b32.xlu0 %v824, 64
          %v832 = vpop.permute.xlu0 %831
          %v834 = vmul.f32 %v823, %v832
          %836 = vrot.lane.b32.xlu0 %v834, 32
          %v837 = vpop.permute.xlu0 %836
          %v839 = vadd.f32 %v829, %v837
          %v840 = vtanh.pop %v839
          %842 = vrot.lane.b32.xlu0 %v840, 64
          %v843 = vpop.permute.xlu0 %842
          %v845 = vmul.f32 %v823, %v843
          %v848 = vunpack.c.l.s4 1966171168
          %v849 = vunpack.c.0.s8 %v848
          %v850 = vlaneseq
          %v851 = vshrl.u32 %v850, 7
          %v852 = vsub.s32 %v849, %v851
          %v853 = vrot.slane %v845, %v852
          %v854 = vcombine.high %v853, %v853
          %v856 = vunpack.c.l.s4 1966171168
          %v857 = vunpack.c.0.s8 %v856
          %v858 = vlaneseq
          %v859 = vshrl.u32 %v858, 7
          %v860 = vsub.s32 %v857, %v859
          %v861 = vrot.slane %v853, %v860
          %v863 = vunpack.c.l.s4 1966171168
          %v864 = vunpack.c.0.s8 %v863
          %v865 = vlaneseq
          %v866 = vshrl.u32 %v865, 7
          %v867 = vsub.s32 %v864, %v866
          %v868 = vrot.slane %v854, %v867
          %v869 = vlaneseq
          %v870 = vshrl.u32 %v869, 7
          %v871 = vsub.s32 0, %v870
          %v872 = vrot.slane %v861, %v871
          %v873 = vlaneseq
          %v874 = vshrl.u32 %v873, 7
          %v875 = vsub.s32 0, %v874
          %v876 = vrot.slane %v868, %v875
          %881 = vrot.lane.b32.xlu0 %v564, 96
          %v882 = vpop.permute.xlu0 %881
          %883 = vrot.lane.b32.xlu0 %v565, 96
          %v884 = vpop.permute.xlu0 %883
          %v887 = vmul.f32 %v872, %v882
          %v888 = vmul.f32 %v876, %v884
          %891 = vrot.lane.b32.xlu0 %v887, 32
          %v892 = vpop.permute.xlu0 %891
          %893 = vrot.lane.b32.xlu0 %v888, 32
          %v894 = vpop.permute.xlu0 %893
          %v897 = vsel %vm620, %v892, 0.0
          %898 = vadd.xlane.f32.xlu0 %v897
          %v899 = vpop.xlane.xlu0 %898
          %v900 = vsel %vm620, %v894, 0.0
          %901 = vadd.xlane.f32.xlu0 %v900
          %v902 = vpop.xlane.xlu0 %901
          %v905 = vlaneseq
          %v906 = vand.u32 %v905, 127
          %v907 = vlaneseq
          %v908 = vshrl.u32 %v907, 7
          %v909 = vsub.s32 %v906, %v908
          %v910 = vrot.slane %v899, %v909
          %v911 = vlaneseq
          %v912 = vshrl.u32 %v911, 7
          %v913 = vsub.s32 %v906, %v912
          %v914 = vrot.slane %v902, %v913
          %vm915 = vcmask 1041409
          %v916 = vsel %vm915, %v914, %v910
          %vm918 = vcmask 58368
          %v919 = vsel %vm918, %v916, -inf
          %920 = vmax.xlane.f32.xlu0 %v919
          %v921 = vpop.xlane.xlu0 %920
          %v923 = vlaneseq
          %v924 = vshrl.u32 %v923, 7
          %v925 = vsub.s32 0, %v924
          %v926 = vrot.slane %v921, %v925
          %v927 = vlaneseq
          %v928 = vshrl.u32 %v927, 7
          %v929 = vsub.s32 1, %v928
          %v930 = vrot.slane %v921, %v929
          %v933 = vsub.f32 %v899, %v926
          %v934 = vsub.f32 %v902, %v930
          %v935 = vmul.f32 %v933, 1.442695
          %v936 = vpow.pop %v935
          %v937 = vmul.f32 %v934, 1.442695
          %v938 = vpow.pop %v937
          %941 = vset.pattern.permute.xlu0 0
          %942 = vperm.xlu0 %941, %v936
          %v943 = vpop.permute.xlu0 %942
          %944 = vset.pattern.permute.xlu0 0
          %945 = vperm.xlu0 %944, %v938
          %v946 = vpop.permute.xlu0 %945
          %v947 = vlaneseq
          %v948 = vshrl.u32 %v947, 7
          %v949 = vsub.s32 %v906, %v948
          %v950 = vrot.slane %v943, %v949
          %v951 = vlaneseq
          %v952 = vshrl.u32 %v951, 7
          %v953 = vsub.s32 %v906, %v952
          %v954 = vrot.slane %v946, %v953
          %v955 = vsel %vm915, %v954, %v950
          %v957 = vsel %vm918, %v955, 0.0
          %958 = vadd.xlane.f32.xlu0 %v957
          %v959 = vpop.xlane.xlu0 %958
          %v961 = vlaneseq
          %v962 = vshrl.u32 %v961, 7
          %v963 = vsub.s32 0, %v962
          %v964 = vrot.slane %v959, %v963
          %v965 = vlaneseq
          %v966 = vshrl.u32 %v965, 7
          %v967 = vsub.s32 1, %v966
          %v968 = vrot.slane %v959, %v967
          %v971 = vrcp.pop %v964
          %v972 = vmul.f32 %v936, %v971
          %v973 = vrcp.pop %v968
          %v974 = vmul.f32 %v938, %v973
          %976 = vset.pattern.permute.xlu0 0
          %977 = vperm.xlu0 %976, %v972
          %v978 = vpop.permute.xlu0 %977
          %981 = vset.pattern.permute.xlu0 0
          %982 = vperm.xlu0 %981, %v974
          %v983 = vpop.permute.xlu0 %982
          %v985 = vmul.f32 %v978, %v564
          %v986 = vmul.f32 %v983, %v565
          %v987 = vsel %vm620, %v985, 0.0
          %v988 = vrot.slane %v987, 4
          %v989 = vadd.f32 %v987, %v988
          %v990 = vrot.slane %v989, 2
          %v991 = vadd.f32 %v989, %v990
          %v992 = vrot.slane %v991, 1
          %v993 = vadd.f32 %v991, %v992
          %v994 = vsel %vm620, %v986, 0.0
          %v995 = vrot.slane %v994, 4
          %v996 = vadd.f32 %v994, %v995
          %v997 = vrot.slane %v996, 2
          %v998 = vadd.f32 %v996, %v997
          %v999 = vrot.slane %v998, 1
          %v1000 = vadd.f32 %v998, %v999
          %v1001 = vpack.c.bf16 %v993, %v993
          %v1002 = vpack.c.bf16 %v1000, %v1000
          %v1003 = vpack.c.bf16 %v845, %v845
          %1005 = vrot.lane.b32.xlu0 %v1003, 32
          %v1006 = vpop.permute.xlu0 %1005
          %v1011 = vunpack.c.l.b16 %v584
          %v1012 = vunpack.c.l.b16 %v585
          %v1013 = vunpack.c.l.b16 %v586
          %v1014 = vunpack.c.l.b16 %v587
          %v1015 = vpack.c.b16 %v1012, %v1011
          %v1016 = vpack.c.b16 %v1014, %v1013
          %v1020 = vsel %vm620, %v1006, 0
          %1022 = vmatprep.subr.bf16.mxu0 0
          %1023 = vmatpush1.bf16.msra.mxu0 %v1015
          %1024 = vmatprep.subr.bf16.mxu0 0
          %1025 = vmatpush1.bf16.msra.mxu0 %v1016
          %1026 = vmatprep.subr.bf16.mxu0 0
          %1027 = vmatpush1.bf16.msra.mxu0 0
          %1028 = vmatprep.subr.bf16.mxu0 0
          %1029 = vmatpush1.bf16.msra.mxu0 0
          %1030 = vmatprep.subr.bf16.mxu0 0
          %1031 = vmatpush1.bf16.msra.mxu0 0
          %1032 = vmatprep.subr.bf16.mxu0 0
          %1033 = vmatpush1.bf16.msra.mxu0 0
          %1034 = vmatprep.subr.bf16.mxu0 0
          %1035 = vmatpush1.bf16.msra.mxu0 0
          %1036 = vmatprep.subr.bf16.mxu0 0
          %1037 = vmatpush1.bf16.msra.mxu0 0
          %1038 = vmatprep.subr.bf16.mxu0 0
          %1039 = vmatpush1.bf16.msra.mxu0 0
          %1040 = vmatprep.subr.bf16.mxu0 0
          %1041 = vmatpush1.bf16.msra.mxu0 0
          %1042 = vmatprep.subr.bf16.mxu0 0
          %1043 = vmatpush1.bf16.msra.mxu0 0
          %1044 = vmatprep.subr.bf16.mxu0 0
          %1045 = vmatpush1.bf16.msra.mxu0 0
          %1046 = vmatprep.subr.bf16.mxu0 0
          %1047 = vmatpush1.bf16.msra.mxu0 0
          %1048 = vmatprep.subr.bf16.mxu0 0
          %1049 = vmatpush1.bf16.msra.mxu0 0
          %1050 = vmatprep.subr.bf16.mxu0 0
          %1051 = vmatpush1.bf16.msra.mxu0 0
          %1052 = vmatprep.subr.bf16.mxu0 0
          %1053 = vmatpush1.bf16.msra.mxu0 0
          %1054 = vmatprep.mubr.bf16.mxu0 0
          %1055 = vmatmul.mubr.bf16.gmra.mrb[0].mxu0 %v1020
          %v1056 = vpop.f32.mrb[0].mxu0
          %v1057 = vadd.f32 0.0, %v1056
          %v1058 = vpop.f32.mrb[0].mxu0
          %v1059 = vpop.f32.mrb[0].mxu0
          %v1060 = vpop.f32.mrb[0].mxu0
          %1061 = vdwg.mxu0
          %v1064 = vunpack.c.l.b16 %v1001
          %v1065 = vunpack.c.l.b16 %v1002
          %v1066 = vsel %vm915, %v1065, %v1064
          %v1067 = vpack.c.b16 %v1066, %v1066
          %v1072 = vunpack.c.l.b16 %v580
          %v1073 = vunpack.c.l.b16 %v581
          %v1074 = vunpack.c.l.b16 %v582
          %v1075 = vunpack.c.l.b16 %v583
          %v1076 = vpack.c.b16 %v1073, %v1072
          %v1077 = vpack.c.b16 %v1075, %v1074
          %v1081 = vsel %vm620, %v1067, 0
          %1083 = vmatprep.subr.bf16.mxu0 0
          %1084 = vmatpush1.bf16.msra.mxu0 %v1076
          %1085 = vmatprep.subr.bf16.mxu0 0
          %1086 = vmatpush1.bf16.msra.mxu0 %v1077
          %1087 = vmatprep.subr.bf16.mxu0 0
          %1088 = vmatpush1.bf16.msra.mxu0 0
          %1089 = vmatprep.subr.bf16.mxu0 0
          %1090 = vmatpush1.bf16.msra.mxu0 0
          %1091 = vmatprep.subr.bf16.mxu0 0
          %1092 = vmatpush1.bf16.msra.mxu0 0
          %1093 = vmatprep.subr.bf16.mxu0 0
          %1094 = vmatpush1.bf16.msra.mxu0 0
          %1095 = vmatprep.subr.bf16.mxu0 0
          %1096 = vmatpush1.bf16.msra.mxu0 0
          %1097 = vmatprep.subr.bf16.mxu0 0
          %1098 = vmatpush1.bf16.msra.mxu0 0
          %1099 = vmatprep.subr.bf16.mxu0 0
          %1100 = vmatpush1.bf16.msra.mxu0 0
          %1101 = vmatprep.subr.bf16.mxu0 0
          %1102 = vmatpush1.bf16.msra.mxu0 0
          %1103 = vmatprep.subr.bf16.mxu0 0
          %1104 = vmatpush1.bf16.msra.mxu0 0
          %1105 = vmatprep.subr.bf16.mxu0 0
          %1106 = vmatpush1.bf16.msra.mxu0 0
          %1107 = vmatprep.subr.bf16.mxu0 0
          %1108 = vmatpush1.bf16.msra.mxu0 0
          %1109 = vmatprep.subr.bf16.mxu0 0
          %1110 = vmatpush1.bf16.msra.mxu0 0
          %1111 = vmatprep.subr.bf16.mxu0 0
          %1112 = vmatpush1.bf16.msra.mxu0 0
          %1113 = vmatprep.subr.bf16.mxu0 0
          %1114 = vmatpush1.bf16.msra.mxu0 0
          %1115 = vmatprep.mubr.bf16.mxu0 0
          %1116 = vmatmul.mubr.bf16.gmra.mrb[0].mxu0 %v1081
          %v1117 = vpop.f32.mrb[0].mxu0
          %v1118 = vadd.f32 %v1057, %v1117
          %v1119 = vpop.f32.mrb[0].mxu0
          %v1120 = vpop.f32.mrb[0].mxu0
          %v1121 = vpop.f32.mrb[0].mxu0
          %1122 = vdwg.mxu0
          %v1124 = vlaneseq
          %v1125 = vshrl.u32 %v1124, 7
          %v1126 = vsub.s32 0, %v1125
          %v1127 = vrot.slane %v588, %v1126
          %v1129 = vadd.f32 %v1118, %v1127
          %v1130 = vtanh.pop %v1129
          %s1131 = scalar_lea.vmem %s547, %s664
          %vm1132 = vcmask 254976
          %1133 = vst.msk [vmem:[%s1131] sm:$0x3] %vm1132, %v1130
          %v1134 = vlaneseq
          %v1135 = vshrl.u32 %v1134, 7
          %v1136 = vsub.s32 %v906, %v1135
          %v1137 = vrot.slane %v978, %v1136
          %v1138 = vlaneseq
          %v1139 = vshrl.u32 %v1138, 7
          %v1140 = vsub.s32 %v906, %v1139
          %v1141 = vrot.slane %v983, %v1140
          %v1142 = vsel %vm915, %v1141, %v1137
          %s1144 = scalar_lea.vmem %s512, %s664 [#allocation4]
          %1145 = vst.msk [vmem:[%s1144] sm:$0x3] %vm918, %v1142
          %1146 = vmatprep.subr.bf16.mxu0 0
          %1147 = vmatpush1.bf16.msra.mxu0 %v616
          %1148 = vmatprep.subr.bf16.mxu0 0
          %1149 = vmatpush1.bf16.msra.mxu0 %v617
          %1150 = vmatprep.subr.bf16.mxu0 0
          %1151 = vmatpush1.bf16.msra.mxu0 0
          %1152 = vmatprep.subr.bf16.mxu0 0
          %1153 = vmatpush1.bf16.msra.mxu0 0
          %1154 = vmatprep.subr.bf16.mxu0 0
          %1155 = vmatpush1.bf16.msra.mxu0 0
          %1156 = vmatprep.subr.bf16.mxu0 0
          %1157 = vmatpush1.bf16.msra.mxu0 0
          %1158 = vmatprep.subr.bf16.mxu0 0
          %1159 = vmatpush1.bf16.msra.mxu0 0
          %1160 = vmatprep.subr.bf16.mxu0 0
          %1161 = vmatpush1.bf16.msra.mxu0 0
          %1162 = vmatprep.subr.bf16.mxu0 0
          %1163 = vmatpush1.bf16.msra.mxu0 0
          %1164 = vmatprep.subr.bf16.mxu0 0
          %1165 = vmatpush1.bf16.msra.mxu0 0
          %1166 = vmatprep.subr.bf16.mxu0 0
          %1167 = vmatpush1.bf16.msra.mxu0 0
          %1168 = vmatprep.subr.bf16.mxu0 0
          %1169 = vmatpush1.bf16.msra.mxu0 0
          %1170 = vmatprep.subr.bf16.mxu0 0
          %1171 = vmatpush1.bf16.msra.mxu0 0
          %1172 = vmatprep.subr.bf16.mxu0 0
          %1173 = vmatpush1.bf16.msra.mxu0 0
          %1174 = vmatprep.subr.bf16.mxu0 0
          %1175 = vmatpush1.bf16.msra.mxu0 0
          %1176 = vmatprep.subr.bf16.mxu0 0
          %1177 = vmatpush1.bf16.msra.mxu0 0
          %1178 = vmatprep.mubr.bf16.mxu0 0
          %1179 = vmatmul.mubr.bf16.gmra.mrb[0].mxu0 %v769
          %v1180 = vpop.f32.mrb[0].mxu0
          %v1181 = vadd.f32 0.0, %v1180
          %v1182 = vpop.f32.mrb[0].mxu0
          %v1183 = vpop.f32.mrb[0].mxu0
          %v1184 = vpop.f32.mrb[0].mxu0
          %1185 = vdwg.mxu0
          %s1186 = smul.u32 %s606, 2
          %s1187 = scalar_lea.vmem %s524, %s1186
          %v1188 = vld [vmem:[%s1187] sm:$0x3]
          %v1189 = vadd.f32 %v1188, %v1181
          %v1190 = vxor.u32 %v1189, 2147483648
          %v1191 = vmul.f32 %v1190, 1.442695
          %v1192 = vpow.pop %v1191
          %v1193 = vadd.f32 %v1192, 1.0
          %v1194 = vrcp.pop %v1193
          %v1195 = vmul.f32 1.0, %v1194
          %v1196 = vtanh.pop %v1189
          %v1197 = vmul.f32 %v1195, %v689
          %1199 = vrot.lane.b32.xlu0 %v1196, 64
          %v1200 = vpop.permute.xlu0 %1199
          %v1202 = vmul.f32 %v1195, %v1200
          %1204 = vrot.lane.b32.xlu0 %v1202, 32
          %v1205 = vpop.permute.xlu0 %1204
          %v1207 = vadd.f32 %v1197, %v1205
          %v1208 = vtanh.pop %v1207
          %1210 = vrot.lane.b32.xlu0 %v1208, 64
          %v1211 = vpop.permute.xlu0 %1210
          %v1213 = vmul.f32 %v1195, %v1211
          %1214 = vmatprep.subr.bf16.mxu0 0
          %1215 = vmatpush1.bf16.msra.mxu0 %v705
          %1216 = vmatprep.subr.bf16.mxu0 0
          %1217 = vmatpush1.bf16.msra.mxu0 %v706
          %1218 = vmatprep.subr.bf16.mxu0 0
          %1219 = vmatpush1.bf16.msra.mxu0 0
          %1220 = vmatprep.subr.bf16.mxu0 0
          %1221 = vmatpush1.bf16.msra.mxu0 0
          %1222 = vmatprep.subr.bf16.mxu0 0
          %1223 = vmatpush1.bf16.msra.mxu0 0
          %1224 = vmatprep.subr.bf16.mxu0 0
          %1225 = vmatpush1.bf16.msra.mxu0 0
          %1226 = vmatprep.subr.bf16.mxu0 0
          %1227 = vmatpush1.bf16.msra.mxu0 0
          %1228 = vmatprep.subr.bf16.mxu0 0
          %1229 = vmatpush1.bf16.msra.mxu0 0
          %1230 = vmatprep.subr.bf16.mxu0 0
          %1231 = vmatpush1.bf16.msra.mxu0 0
          %1232 = vmatprep.subr.bf16.mxu0 0
          %1233 = vmatpush1.bf16.msra.mxu0 0
          %1234 = vmatprep.subr.bf16.mxu0 0
          %1235 = vmatpush1.bf16.msra.mxu0 0
          %1236 = vmatprep.subr.bf16.mxu0 0
          %1237 = vmatpush1.bf16.msra.mxu0 0
          %1238 = vmatprep.subr.bf16.mxu0 0
          %1239 = vmatpush1.bf16.msra.mxu0 0
          %1240 = vmatprep.subr.bf16.mxu0 0
          %1241 = vmatpush1.bf16.msra.mxu0 0
          %1242 = vmatprep.subr.bf16.mxu0 0
          %1243 = vmatpush1.bf16.msra.mxu0 0
          %1244 = vmatprep.subr.bf16.mxu0 0
          %1245 = vmatpush1.bf16.msra.mxu0 0
          %1246 = vmatprep.mubr.bf16.mxu0 0
          %1247 = vmatmul.mubr.bf16.gmra.mrb[0].mxu0 %v1020
          %v1248 = vpop.f32.mrb[0].mxu0
          %v1249 = vadd.f32 0.0, %v1248
          %v1250 = vpop.f32.mrb[0].mxu0
          %v1251 = vpop.f32.mrb[0].mxu0
          %v1252 = vpop.f32.mrb[0].mxu0
          %1253 = vdwg.mxu0
          %v1254 = vpack.c.bf16 %v1213, %v1213
          %1256 = vrot.lane.b32.xlu0 %v1254, 32
          %v1257 = vpop.permute.xlu0 %1256
          %v1259 = vsel %vm620, %v1257, 0
          %1261 = vmatprep.subr.bf16.mxu0 0
          %1262 = vmatpush1.bf16.msra.mxu0 %v764
          %1263 = vmatprep.subr.bf16.mxu0 0
          %1264 = vmatpush1.bf16.msra.mxu0 %v765
          %1265 = vmatprep.subr.bf16.mxu0 0
          %1266 = vmatpush1.bf16.msra.mxu0 0
          %1267 = vmatprep.subr.bf16.mxu0 0
          %1268 = vmatpush1.bf16.msra.mxu0 0
          %1269 = vmatprep.subr.bf16.mxu0 0
          %1270 = vmatpush1.bf16.msra.mxu0 0
          %1271 = vmatprep.subr.bf16.mxu0 0
          %1272 = vmatpush1.bf16.msra.mxu0 0
          %1273 = vmatprep.subr.bf16.mxu0 0
          %1274 = vmatpush1.bf16.msra.mxu0 0
          %1275 = vmatprep.subr.bf16.mxu0 0
          %1276 = vmatpush1.bf16.msra.mxu0 0
          %1277 = vmatprep.subr.bf16.mxu0 0
          %1278 = vmatpush1.bf16.msra.mxu0 0
          %1279 = vmatprep.subr.bf16.mxu0 0
          %1280 = vmatpush1.bf16.msra.mxu0 0
          %1281 = vmatprep.subr.bf16.mxu0 0
          %1282 = vmatpush1.bf16.msra.mxu0 0
          %1283 = vmatprep.subr.bf16.mxu0 0
          %1284 = vmatpush1.bf16.msra.mxu0 0
          %1285 = vmatprep.subr.bf16.mxu0 0
          %1286 = vmatpush1.bf16.msra.mxu0 0
          %1287 = vmatprep.subr.bf16.mxu0 0
          %1288 = vmatpush1.bf16.msra.mxu0 0
          %1289 = vmatprep.subr.bf16.mxu0 0
          %1290 = vmatpush1.bf16.msra.mxu0 0
          %1291 = vmatprep.subr.bf16.mxu0 0
          %1292 = vmatpush1.bf16.msra.mxu0 0
          %1293 = vmatprep.mubr.bf16.mxu0 0
          %1294 = vmatmul.mubr.bf16.gmra.mrb[0].mxu0 %v1259
          %v1295 = vpop.f32.mrb[0].mxu0
          %v1296 = vadd.f32 %v1249, %v1295
          %v1297 = vpop.f32.mrb[0].mxu0
          %v1298 = vpop.f32.mrb[0].mxu0
          %v1299 = vpop.f32.mrb[0].mxu0
          %1300 = vdwg.mxu0
          %v1301 = vadd.f32 %v1296, %v815
          %v1302 = vxor.u32 %v1301, 2147483648
          %v1303 = vmul.f32 %v1302, 1.442695
          %v1304 = vpow.pop %v1303
          %v1305 = vadd.f32 %v1304, 1.0
          %v1306 = vrcp.pop %v1305
          %v1307 = vmul.f32 1.0, %v1306
          %v1308 = vtanh.pop %v1301
          %v1309 = vmul.f32 %v1307, %v839
          %1311 = vrot.lane.b32.xlu0 %v1308, 64
          %v1312 = vpop.permute.xlu0 %1311
          %v1314 = vmul.f32 %v1307, %v1312
          %1316 = vrot.lane.b32.xlu0 %v1314, 32
          %v1317 = vpop.permute.xlu0 %1316
          %v1319 = vadd.f32 %v1309, %v1317
          %v1320 = vtanh.pop %v1319
          %1322 = vrot.lane.b32.xlu0 %v1320, 64
          %v1323 = vpop.permute.xlu0 %1322
          %v1325 = vmul.f32 %v1307, %v1323
          %v1328 = vunpack.c.l.s4 1966171168
          %v1329 = vunpack.c.0.s8 %v1328
          %v1330 = vlaneseq
          %v1331 = vshrl.u32 %v1330, 7
          %v1332 = vsub.s32 %v1329, %v1331
          %v1333 = vrot.slane %v1325, %v1332
          %v1334 = vcombine.high %v1333, %v1333
          %v1336 = vunpack.c.l.s4 1966171168
          %v1337 = vunpack.c.0.s8 %v1336
          %v1338 = vlaneseq
          %v1339 = vshrl.u32 %v1338, 7
          %v1340 = vsub.s32 %v1337, %v1339
          %v1341 = vrot.slane %v1333, %v1340
          %v1343 = vunpack.c.l.s4 1966171168
          %v1344 = vunpack.c.0.s8 %v1343
          %v1345 = vlaneseq
          %v1346 = vshrl.u32 %v1345, 7
          %v1347 = vsub.s32 %v1344, %v1346
          %v1348 = vrot.slane %v1334, %v1347
          %v1349 = vlaneseq
          %v1350 = vshrl.u32 %v1349, 7
          %v1351 = vsub.s32 0, %v1350
          %v1352 = vrot.slane %v1341, %v1351
          %v1353 = vlaneseq
          %v1354 = vshrl.u32 %v1353, 7
          %v1355 = vsub.s32 0, %v1354
          %v1356 = vrot.slane %v1348, %v1355
          %v1359 = vmul.f32 %v1352, %v882
          %v1360 = vmul.f32 %v1356, %v884
          %1363 = vrot.lane.b32.xlu0 %v1359, 32
          %v1364 = vpop.permute.xlu0 %1363
          %1365 = vrot.lane.b32.xlu0 %v1360, 32
          %v1366 = vpop.permute.xlu0 %1365
          %v1369 = vsel %vm620, %v1364, 0.0
          %1370 = vadd.xlane.f32.xlu0 %v1369
          %v1371 = vpop.xlane.xlu0 %1370
          %v1372 = vsel %vm620, %v1366, 0.0
          %1373 = vadd.xlane.f32.xlu0 %v1372
          %v1374 = vpop.xlane.xlu0 %1373
          %v1377 = vlaneseq
          %v1378 = vshrl.u32 %v1377, 7
          %v1379 = vsub.s32 %v906, %v1378
          %v1380 = vrot.slane %v1371, %v1379
          %v1381 = vlaneseq
          %v1382 = vshrl.u32 %v1381, 7
          %v1383 = vsub.s32 %v906, %v1382
          %v1384 = vrot.slane %v1374, %v1383
          %v1385 = vsel %vm915, %v1384, %v1380
          %v1387 = vsel %vm918, %v1385, -inf
          %1388 = vmax.xlane.f32.xlu0 %v1387
          %v1389 = vpop.xlane.xlu0 %1388
          %v1391 = vlaneseq
          %v1392 = vshrl.u32 %v1391, 7
          %v1393 = vsub.s32 0, %v1392
          %v1394 = vrot.slane %v1389, %v1393
          %v1395 = vlaneseq
          %v1396 = vshrl.u32 %v1395, 7
          %v1397 = vsub.s32 1, %v1396
          %v1398 = vrot.slane %v1389, %v1397
          %v1401 = vsub.f32 %v1371, %v1394
          %v1402 = vsub.f32 %v1374, %v1398
          %v1403 = vmul.f32 %v1401, 1.442695
          %v1404 = vpow.pop %v1403
          %v1405 = vmul.f32 %v1402, 1.442695
          %v1406 = vpow.pop %v1405
          %1409 = vset.pattern.permute.xlu0 0
          %1410 = vperm.xlu0 %1409, %v1404
          %v1411 = vpop.permute.xlu0 %1410
          %1412 = vset.pattern.permute.xlu0 0
          %1413 = vperm.xlu0 %1412, %v1406
          %v1414 = vpop.permute.xlu0 %1413
          %v1415 = vlaneseq
          %v1416 = vshrl.u32 %v1415, 7
          %v1417 = vsub.s32 %v906, %v1416
          %v1418 = vrot.slane %v1411, %v1417
          %v1419 = vlaneseq
          %v1420 = vshrl.u32 %v1419, 7
          %v1421 = vsub.s32 %v906, %v1420
          %v1422 = vrot.slane %v1414, %v1421
          %v1423 = vsel %vm915, %v1422, %v1418
          %v1425 = vsel %vm918, %v1423, 0.0
          %1426 = vadd.xlane.f32.xlu0 %v1425
          %v1427 = vpop.xlane.xlu0 %1426
          %v1429 = vlaneseq
          %v1430 = vshrl.u32 %v1429, 7
          %v1431 = vsub.s32 0, %v1430
          %v1432 = vrot.slane %v1427, %v1431
          %v1433 = vlaneseq
          %v1434 = vshrl.u32 %v1433, 7
          %v1435 = vsub.s32 1, %v1434
          %v1436 = vrot.slane %v1427, %v1435
          %v1439 = vrcp.pop %v1432
          %v1440 = vmul.f32 %v1404, %v1439
          %v1441 = vrcp.pop %v1436
          %v1442 = vmul.f32 %v1406, %v1441
          %1444 = vset.pattern.permute.xlu0 0
          %1445 = vperm.xlu0 %1444, %v1440
          %v1446 = vpop.permute.xlu0 %1445
          %1449 = vset.pattern.permute.xlu0 0
          %1450 = vperm.xlu0 %1449, %v1442
          %v1451 = vpop.permute.xlu0 %1450
          %v1453 = vmul.f32 %v1446, %v564
          %v1454 = vmul.f32 %v1451, %v565
          %v1455 = vsel %vm620, %v1453, 0.0
          %v1456 = vrot.slane %v1455, 4
          %v1457 = vadd.f32 %v1455, %v1456
          %v1458 = vrot.slane %v1457, 2
          %v1459 = vadd.f32 %v1457, %v1458
          %v1460 = vrot.slane %v1459, 1
          %v1461 = vadd.f32 %v1459, %v1460
          %v1462 = vsel %vm620, %v1454, 0.0
          %v1463 = vrot.slane %v1462, 4
          %v1464 = vadd.f32 %v1462, %v1463
          %v1465 = vrot.slane %v1464, 2
          %v1466 = vadd.f32 %v1464, %v1465
          %v1467 = vrot.slane %v1466, 1
          %v1468 = vadd.f32 %v1466, %v1467
          %v1469 = vpack.c.bf16 %v1461, %v1461
          %v1470 = vpack.c.bf16 %v1468, %v1468
          %v1471 = vpack.c.bf16 %v1325, %v1325
          %1473 = vrot.lane.b32.xlu0 %v1471, 32
          %v1474 = vpop.permute.xlu0 %1473
          %v1476 = vsel %vm620, %v1474, 0
          %1478 = vmatprep.subr.bf16.mxu0 0
          %1479 = vmatpush1.bf16.msra.mxu0 %v1015
          %1480 = vmatprep.subr.bf16.mxu0 0
          %1481 = vmatpush1.bf16.msra.mxu0 %v1016
          %1482 = vmatprep.subr.bf16.mxu0 0
          %1483 = vmatpush1.bf16.msra.mxu0 0
          %1484 = vmatprep.subr.bf16.mxu0 0
          %1485 = vmatpush1.bf16.msra.mxu0 0
          %1486 = vmatprep.subr.bf16.mxu0 0
          %1487 = vmatpush1.bf16.msra.mxu0 0
          %1488 = vmatprep.subr.bf16.mxu0 0
          %1489 = vmatpush1.bf16.msra.mxu0 0
          %1490 = vmatprep.subr.bf16.mxu0 0
          %1491 = vmatpush1.bf16.msra.mxu0 0
          %1492 = vmatprep.subr.bf16.mxu0 0
          %1493 = vmatpush1.bf16.msra.mxu0 0
          %1494 = vmatprep.subr.bf16.mxu0 0
          %1495 = vmatpush1.bf16.msra.mxu0 0
          %1496 = vmatprep.subr.bf16.mxu0 0
          %1497 = vmatpush1.bf16.msra.mxu0 0
          %1498 = vmatprep.subr.bf16.mxu0 0
          %1499 = vmatpush1.bf16.msra.mxu0 0
          %1500 = vmatprep.subr.bf16.mxu0 0
          %1501 = vmatpush1.bf16.msra.mxu0 0
          %1502 = vmatprep.subr.bf16.mxu0 0
          %1503 = vmatpush1.bf16.msra.mxu0 0
          %1504 = vmatprep.subr.bf16.mxu0 0
          %1505 = vmatpush1.bf16.msra.mxu0 0
          %1506 = vmatprep.subr.bf16.mxu0 0
          %1507 = vmatpush1.bf16.msra.mxu0 0
          %1508 = vmatprep.subr.bf16.mxu0 0
          %1509 = vmatpush1.bf16.msra.mxu0 0
          %1510 = vmatprep.mubr.bf16.mxu0 0
          %1511 = vmatmul.mubr.bf16.gmra.mrb[0].mxu0 %v1476
          %v1512 = vpop.f32.mrb[0].mxu0
          %v1513 = vadd.f32 0.0, %v1512
          %v1514 = vpop.f32.mrb[0].mxu0
          %v1515 = vpop.f32.mrb[0].mxu0
          %v1516 = vpop.f32.mrb[0].mxu0
          %1517 = vdwg.mxu0
          %v1520 = vunpack.c.l.b16 %v1469
          %v1521 = vunpack.c.l.b16 %v1470
          %v1522 = vsel %vm915, %v1521, %v1520
          %v1523 = vpack.c.b16 %v1522, %v1522
          %v1525 = vsel %vm620, %v1523, 0
          %1527 = vmatprep.subr.bf16.mxu0 0
          %1528 = vmatpush1.bf16.msra.mxu0 %v1076
          %1529 = vmatprep.subr.bf16.mxu0 0
          %1530 = vmatpush1.bf16.msra.mxu0 %v1077
          %1531 = vmatprep.subr.bf16.mxu0 0
          %1532 = vmatpush1.bf16.msra.mxu0 0
          %1533 = vmatprep.subr.bf16.mxu0 0
          %1534 = vmatpush1.bf16.msra.mxu0 0
          %1535 = vmatprep.subr.bf16.mxu0 0
          %1536 = vmatpush1.bf16.msra.mxu0 0
          %1537 = vmatprep.subr.bf16.mxu0 0
          %1538 = vmatpush1.bf16.msra.mxu0 0
          %1539 = vmatprep.subr.bf16.mxu0 0
          %1540 = vmatpush1.bf16.msra.mxu0 0
          %1541 = vmatprep.subr.bf16.mxu0 0
          %1542 = vmatpush1.bf16.msra.mxu0 0
          %1543 = vmatprep.subr.bf16.mxu0 0
          %1544 = vmatpush1.bf16.msra.mxu0 0
          %1545 = vmatprep.subr.bf16.mxu0 0
          %1546 = vmatpush1.bf16.msra.mxu0 0
          %1547 = vmatprep.subr.bf16.mxu0 0
          %1548 = vmatpush1.bf16.msra.mxu0 0
          %1549 = vmatprep.subr.bf16.mxu0 0
          %1550 = vmatpush1.bf16.msra.mxu0 0
          %1551 = vmatprep.subr.bf16.mxu0 0
          %1552 = vmatpush1.bf16.msra.mxu0 0
          %1553 = vmatprep.subr.bf16.mxu0 0
          %1554 = vmatpush1.bf16.msra.mxu0 0
          %1555 = vmatprep.subr.bf16.mxu0 0
          %1556 = vmatpush1.bf16.msra.mxu0 0
          %1557 = vmatprep.subr.bf16.mxu0 0
          %1558 = vmatpush1.bf16.msra.mxu0 0
          %1559 = vmatprep.mubr.bf16.mxu0 0
          %1560 = vmatmul.mubr.bf16.gmra.mrb[0].mxu0 %v1525
          %v1561 = vpop.f32.mrb[0].mxu0
          %v1562 = vadd.f32 %v1513, %v1561
          %v1563 = vpop.f32.mrb[0].mxu0
          %v1564 = vpop.f32.mrb[0].mxu0
          %v1565 = vpop.f32.mrb[0].mxu0
          %1566 = vdwg.mxu0
          %v1567 = vadd.f32 %v1562, %v1127
          %v1568 = vtanh.pop %v1567
          %s1569 = scalar_lea.vmem %s547, %s1186
          %1570 = vst.msk [vmem:[%s1569] sm:$0x3] %vm1132, %v1568
          %v1571 = vlaneseq
          %v1572 = vshrl.u32 %v1571, 7
          %v1573 = vsub.s32 %v906, %v1572
          %v1574 = vrot.slane %v1446, %v1573
          %v1575 = vlaneseq
          %v1576 = vshrl.u32 %v1575, 7
          %v1577 = vsub.s32 %v906, %v1576
          %v1578 = vrot.slane %v1451, %v1577
          %v1579 = vsel %vm915, %v1578, %v1574
          %s1581 = scalar_lea.vmem %s512, %s1186 [#allocation4]
          %1582 = vst.msk [vmem:[%s1581] sm:$0x3] %vm918, %v1579
          %1584 = vrot.lane.b32.xlu0 %v1213, 32
          %v1585 = vpop.permute.xlu0 %1584
          %1587 = vrot.lane.b32.xlu0 %v1325, 32
          %v1588 = vpop.permute.xlu0 %1587
          %1591 = vrot.lane.b32.xlu0 %v1207, 96
          %v1592 = vpop.permute.xlu0 %1591
          %1595 = vrot.lane.b32.xlu0 %v1319, 96
          %v1596 = vpop.permute.xlu0 %1595
        $region69: #{dec_forward_train.5} parent=59 // loop_footer
          %s600 = sadd.s32 1, %s596
        $region70: #{dec_forward_train.5} parent=59 // loop_footer_branch
          %595 = sbr.rel target = $region66
        $region71: #{dec_forward_train.5} parent=59 // loop_exit
          _
        %vm1598 = vcmask 254976
        %1599 = vst.msk [vmem:[#allocation2] sm:$0x3] %vm1598, %v601
        %1600 = vst.msk [vmem:[#allocation3] sm:$0x3] %vm1598, %v603
        %1601 = vst.msk [vmem:[%s590] sm:$0x3] %vm1598, %v602
        %1602 = vst.msk [vmem:[%s593] sm:$0x3] %vm1598, %v604
        %p1603 = scmp.eq.s32.totalorder %s34, 1
        // Predicated region
        $region72: #{dec_forward_train.5} parent=59 // pred_check
          %p1604 = pneg %p1603
        $region73: #{dec_forward_train.5} parent=59 // pred_check_branch
          %1606 = sbr.rel (%p1604) target = $region75
        $region74: #{dec_forward_train.5} parent=59 // pred_region
          %v1607 = vld [vmem:[#allocation2] sm:$0x3]
          %v1608 = vld [vmem:[#allocation2 + $0x2] sm:$0x3]
          %1609 = vst.msk [vmem:[#allocation6] sm:$0x3] %vm1598, %v1607
          %1610 = vst.msk [vmem:[#allocation6 + $0x2] sm:$0x3] %vm1598, %v1608
          %v1611 = vld [vmem:[#allocation3] sm:$0x3]
          %v1612 = vld [vmem:[#allocation3 + $0x2] sm:$0x3]
          %1613 = vst.msk [vmem:[#allocation8] sm:$0x3] %vm1598, %v1611
          %1614 = vst.msk [vmem:[#allocation8 + $0x2] sm:$0x3] %vm1598, %v1612
        $region75: #{dec_forward_train.5} parent=59 // pred_fallthru
          _
        %s1615 = smul.u32 4, %s34
        %p1616 = scmp.lt.s32.totalorder %s1615, 7
        %s1617 = scalar_select %p1616, %s1615, 7
        %p1618 = scmp.lt.s32.totalorder %s33, 0
        %s1619 = scalar_select %p1618, %s33, 0
        %s1620 = sadd.s32 %s1619, %s1617
        %s1621 = smul.addr %s1620, 2
        %s1622 = scalar_lea.vmem %s10, %s1621
        %s1623 = sand.u32 %s311, 1
        %s1624 = scalar_lea.sflag [#allocation5], %s1623
        %s1625 = sand.u32 %s311, 1
        %s1626 = smul.addr %s1625, 8
        %s1627 = scalar_lea.vmem [#allocation4], %s1626
        // Predicated region
        $region76: #{dec_forward_train.5} parent=59 // pred_check
          %p1628 = pneg %p293
        $region77: #{dec_forward_train.5} parent=59 // pred_check_branch
          %1630 = sbr.rel (%p1628) target = $region79
        $region78: #{dec_forward_train.5} parent=59 // pred_region
          %s1631 = smul.u32 4, %s34
        $region79: #{dec_forward_train.5} parent=59 // pred_fallthru
          _
        // Predicated region
        $region80: #{dec_forward_train.5} parent=59 // pred_check
          %p1632 = pneg %p321
        $region81: #{dec_forward_train.5} parent=59 // pred_check_branch
          %1634 = sbr.rel (%p1632) target = $region83
        $region82: #{dec_forward_train.5} parent=59 // pred_region
          %s1635 = smul.u32 4, %s34
          %s1637 = ssub.s32 128, 128
          %1638 = vsyncadd %s1624, %s1637
          %s1639 = sadd.s32 %s33, %s1635
          %s1640 = smul.addr %s1639, 32
          %s1641 = scalar_lea.hbm %s11, %s1640
          %s1642 = sshll.u32 %s1627, 4
          %s1643 = int_to_ptr.vmem [resolvable:$true] %s1642
          %1648 = dma.vmem_to_hbm [thread:$0]  %s1643, 128, %s1641, %s1624, 32, 32, 2
        $region83: #{dec_forward_train.5} parent=59 // pred_fallthru
          _
        // Predicated region
        $region84: #{dec_forward_train.5} parent=59 // pred_check
          %p1649 = pneg %p347
        $region85: #{dec_forward_train.5} parent=59 // pred_check_branch
          %1651 = sbr.rel (%p1649) target = $region87
        $region86: #{dec_forward_train.5} parent=59 // pred_region
          %s1653 = ssub.s32 64, 64
          %1654 = vsyncadd [#allocation7], %s1653
          %s1655 = smul.addr %s33, 32
          %s1656 = scalar_lea.hbm %s12, %s1655
          %s1657 = sshll.u32 [#allocation6], 4
          %s1658 = int_to_ptr.vmem [resolvable:$true] %s1657
          %1663 = dma.vmem_to_hbm [thread:$0]  %s1658, 64, %s1656, [#allocation7], 32, 32, 2
        $region87: #{dec_forward_train.5} parent=59 // pred_fallthru
          _
        // Predicated region
        $region88: #{dec_forward_train.5} parent=59 // pred_check
          %p1664 = pneg %p373
        $region89: #{dec_forward_train.5} parent=59 // pred_check_branch
          %1666 = sbr.rel (%p1664) target = $region91
        $region90: #{dec_forward_train.5} parent=59 // pred_region
          %s1668 = ssub.s32 64, 64
          %1669 = vsyncadd [#allocation7], %s1668
          %s1670 = smul.addr %s33, 32
          %s1671 = scalar_lea.hbm %s13, %s1670
          %s1672 = sshll.u32 [#allocation8], 4
          %s1673 = int_to_ptr.vmem [resolvable:$true] %s1672
          %1678 = dma.vmem_to_hbm [thread:$0]  %s1673, 64, %s1671, [#allocation7], 32, 32, 2
        $region91: #{dec_forward_train.5} parent=59 // pred_fallthru
          _
        // Predicated region
        $region92: #{dec_forward_train.5} parent=59 // pred_check
          %p1679 = pneg %p347
        $region93: #{dec_forward_train.5} parent=59 // pred_check_branch
          %1681 = sbr.rel (%p1679) target = $region95
        $region94: #{dec_forward_train.5} parent=59 // pred_region
          %1682 = dma.done [#allocation7], 64
        $region95: #{dec_forward_train.5} parent=59 // pred_fallthru
          _
        // Predicated region
        $region96: #{dec_forward_train.5} parent=59 // pred_check
          %p1683 = pneg %p373
        $region97: #{dec_forward_train.5} parent=59 // pred_check_branch
          %1685 = sbr.rel (%p1683) target = $region99
        $region98: #{dec_forward_train.5} parent=59 // pred_region
          %1686 = dma.done [#allocation7], 64
        $region99: #{dec_forward_train.5} parent=59 // pred_fallthru
          _
      $region60: #{dec_forward_train.5} parent=5 // pred_fallthru
        _
      %p1687 = scmp.le.s32.totalorder 2, %s24
      // Predicated region
      $region100: #{dec_forward_train.5} parent=5 // pred_check
        %p1688 = pneg %p1687
      $region101: #{dec_forward_train.5} parent=5 // pred_check_branch
        %1690 = sbr.rel (%p1688) target = $region103
      $region102: #{dec_forward_train.5} parent=5 // pred_region
        %s1691 = ssub.s32 %s24, 2
        // Predicated region
        $region104: #{dec_forward_train.5} parent=102 // pred_check
          %p1692 = pneg %p299
        $region105: #{dec_forward_train.5} parent=102 // pred_check_branch
          %1694 = sbr.rel (%p1692) target = $region107
        $region106: #{dec_forward_train.5} parent=102 // pred_region
          %s1695 = smul.u32 4, %s36
          %p1696 = scmp.lt.s32.totalorder %s1695, 7
          %s1697 = scalar_select %p1696, %s1695, 7
          %p1698 = scmp.lt.s32.totalorder %s35, 0
          %s1699 = scalar_select %p1698, %s35, 0
          %s1700 = sadd.s32 %s1699, %s1697
          %s1701 = smul.addr %s1700, 2
          %s1702 = scalar_lea.vmem %s10, %s1701
        $region107: #{dec_forward_train.5} parent=102 // pred_fallthru
          _
        // Predicated region
        $region108: #{dec_forward_train.5} parent=102 // pred_check
          %p1703 = pneg %p327
        $region109: #{dec_forward_train.5} parent=102 // pred_check_branch
          %1705 = sbr.rel (%p1703) target = $region111
        $region110: #{dec_forward_train.5} parent=102 // pred_region
          %s1706 = sand.u32 %s312, 1
          %s1707 = scalar_lea.sflag [#allocation5], %s1706
          %s1708 = sand.u32 %s312, 1
          %s1709 = smul.addr %s1708, 8
          %s1710 = scalar_lea.vmem [#allocation4], %s1709
          %1711 = dma.done %s1707, 128
        $region111: #{dec_forward_train.5} parent=102 // pred_fallthru
          _
      $region103: #{dec_forward_train.5} parent=5 // pred_fallthru
        _
    $region6: #{dec_forward_train.5} parent=1 // loop_footer
      %s28 = sadd.s32 1, %s24
    $region7: #{dec_forward_train.5} parent=1 // loop_footer_branch
      %23 = sbr.rel target = $region3
    $region8: #{dec_forward_train.5} parent=1 // loop_exit
      _
    %1712 = vsyncpa [#allocation5], 1
    %s1713 = scalar_lea.sflag [#allocation5], 1
    %1714 = vsyncpa %s1713, 1
    %1715 = vsyncpa [#allocation7], 1

</llo_original>
